<compile_context>
chip_gen: v6e
topology: v6e:2x2x1
jax: 0.10.0
libtpu: 0.0.40
codegen_flags: <defaults>
</compile_context>

<pallas_src>
import jax
import jax.numpy as jnp
from jax.experimental import pallas as pl
from jax.experimental.pallas import tpu as pltpu


def _banded_conv_weight(w_hwio, W):
    """Build the banded ("im2col along width") weights.

    w_hwio: (3, 3, Cin, Cout)  ->  (3, (W+2)*Cin, W*Cout), one matrix per kernel row kh,
    such that  y[h, w*Cout+co] = sum_kh  xpad[h+kh, :] @ M[kh]  reproduces the 3x3 conv
    with padding=1, where xpad rows are the flattened padded width*(channel) layout.
    """
    _, _, Cin, Cout = w_hwio.shape
    wp = jnp.arange(W + 2)[:, None]              # padded width position  (W+2, 1)
    w = jnp.arange(W)[None, :]                   # output width position  (1, W)
    kw = wp - w                                  # kernel tap             (W+2, W)
    valid = (kw >= 0) & (kw <= 2)
    kw_c = jnp.clip(kw, 0, 2)
    gath = w_hwio[:, kw_c]                       # (3, W+2, W, Cin, Cout)
    m = jnp.where(valid[None, :, :, None, None], gath, 0.0)
    m = jnp.transpose(m, (0, 1, 3, 2, 4))        # (3, W+2, Cin, W, Cout)
    return m.reshape(3, (W + 2) * Cin, W * Cout).astype(jnp.float32)


def _subnet2conv_kernel(x_ref, m1_ref, m2_ref, prm_ref, o_ref, xpad_ref, hpad_ref):
    """Fused conv3x3+IN+ReLU (x2) for one batch element.

    x_ref:    (1, H, W*Cin)                 input, lane-dense (w, c) interleaved
    m1_ref:   (3, (W+2)*Cin,  W*Cout)       banded conv1 weights (one per kh)
    m2_ref:   (3, (W+2)*Cout, W*Cout)       banded conv2 weights
    prm_ref:  (6, Cout)                     rows: b1, g1, be1, b2, g2, be2
    o_ref:    (1, H, W*Cout)                output, lane-dense
    xpad_ref: VMEM (H+2, (W+2)*Cin)         padded-input scratch
    hpad_ref: VMEM (H+2, (W+2)*Cout)        padded-intermediate scratch
    """
    H = o_ref.shape[1]
    WCo = o_ref.shape[2]                     # W * Cout
    Cout = prm_ref.shape[1]
    W = WCo // Cout
    Cin = x_ref.shape[2] // W
    inv_hw = 1.0 / float(H * W)

    # Selection matrices mapping the interleaved lane index l = w*Cout + c <-> channel c.
    sel = (jax.lax.broadcasted_iota(jnp.int32, (WCo, Cout), 0) % Cout ==
           jax.lax.broadcasted_iota(jnp.int32, (WCo, Cout), 1)).astype(jnp.float32)
    sel_t = (jax.lax.broadcasted_iota(jnp.int32, (Cout, WCo), 1) % Cout ==
             jax.lax.broadcasted_iota(jnp.int32, (Cout, WCo), 0)).astype(jnp.float32)

    def conv_in_relu(pad_ref, m_ref, bias, gamma, beta):
        # 3x3 conv as 3 row-shifted matmuls against the banded weights (MXU, N = W*Cout).
        acc = jnp.dot(pad_ref[0:H, :], m_ref[0], preferred_element_type=jnp.float32)
        acc = acc + jnp.dot(pad_ref[1:H + 1, :], m_ref[1],
                            preferred_element_type=jnp.float32)
        acc = acc + jnp.dot(pad_ref[2:H + 2, :], m_ref[2],
                            preferred_element_type=jnp.float32)
        # conv bias, broadcast channel -> interleaved lanes
        acc = acc + jnp.dot(bias, sel_t, preferred_element_type=jnp.float32)

        # InstanceNorm2d (biased var, eps=1e-5, affine): single pass over acc.
        rsum = jnp.sum(acc, axis=0, keepdims=True)          # (1, W*Cout)
        rsq = jnp.sum(acc * acc, axis=0, keepdims=True)     # (1, W*Cout)
        mean = jnp.dot(rsum, sel, preferred_element_type=jnp.float32) * inv_hw  # (1, Cout)
        msq = jnp.dot(rsq, sel, preferred_element_type=jnp.float32) * inv_hw
        var = jnp.maximum(msq - mean * mean, 0.0)
        scale = gamma * jax.lax.rsqrt(var + 1e-5)            # (1, Cout)
        shift = beta - mean * scale                          # (1, Cout)
        scale_l = jnp.dot(scale, sel_t, preferred_element_type=jnp.float32)  # (1, W*Cout)
        shift_l = jnp.dot(shift, sel_t, preferred_element_type=jnp.float32)
        # affine + ReLU
        return jnp.maximum(acc * scale_l + shift_l, 0.0)

    # ---- block 1: build halo in VMEM, conv+IN+ReLU ----
    xpad_ref[...] = jnp.zeros_like(xpad_ref)
    xpad_ref[1:H + 1, Cin:Cin + W * Cin] = x_ref[0]
    y1 = conv_in_relu(xpad_ref, m1_ref,
                      prm_ref[0:1, :], prm_ref[1:2, :], prm_ref[2:3, :])

    # ---- block 2: intermediate never leaves VMEM ----
    hpad_ref[...] = jnp.zeros_like(hpad_ref)
    hpad_ref[1:H + 1, Cout:Cout + WCo] = y1
    y2 = conv_in_relu(hpad_ref, m2_ref,
                      prm_ref[3:4, :], prm_ref[4:5, :], prm_ref[5:6, :])

    # lane-dense store (last dim = W*Cout = 128 here)
    o_ref[...] = y2[None, :, :]


def subnet2conv_forward(x_nchw, p):
    """Pallas implementation of SubNet2Conv.forward (dropout p=0 path)."""
    N, Cin, H, W = x_nchw.shape
    Cout = p["w1"].shape[0]

    # NCHW -> lane-dense (N, H, W*Cin)
    x = jnp.transpose(x_nchw, (0, 2, 3, 1)).reshape(N, H, W * Cin)
    # PyTorch OIHW -> HWIO -> banded matmul weights
    m1 = _banded_conv_weight(jnp.transpose(p["w1"], (2, 3, 1, 0)), W)
    m2 = _banded_conv_weight(jnp.transpose(p["w2"], (2, 3, 1, 0)), W)
    # pack bias / gamma / beta for both blocks into one block -> one DMA
    prm = jnp.stack([p["b1"], p["g1"], p["be1"], p["b2"], p["g2"], p["be2"]], axis=0)

    out = pl.pallas_call(
        _subnet2conv_kernel,
        out_shape=jax.ShapeDtypeStruct((N, H, W * Cout), jnp.float32),
        grid=(N,),
        in_specs=[
            pl.BlockSpec((1, H, W * Cin), lambda n: (n, 0, 0)),
            pl.BlockSpec(m1.shape, lambda n: (0, 0, 0)),
            pl.BlockSpec(m2.shape, lambda n: (0, 0, 0)),
            pl.BlockSpec((6, Cout), lambda n: (0, 0)),
        ],
        out_specs=pl.BlockSpec((1, H, W * Cout), lambda n: (n, 0, 0)),
        scratch_shapes=[
            pltpu.VMEM((H + 2, (W + 2) * Cin), jnp.float32),
            pltpu.VMEM((H + 2, (W + 2) * Cout), jnp.float32),
        ],
        compiler_params=pltpu.CompilerParams(dimension_semantics=("parallel",)),
    )(x, m1, m2, prm)

    # (N, H, W*Cout) -> NCHW
    return jnp.transpose(out.reshape(N, H, W, Cout), (0, 3, 1, 2))


def init_params(key, n_in, n_out):
    """Deterministic synthetic parameters matching SubNet2Conv's shapes."""
    ks = jax.random.split(key, 8)

    def conv_init(kw, kb, cin, cout):
        fan_in = cin * 3 * 3
        bound = 1.0 / jnp.sqrt(fan_in)
        w = jax.random.uniform(kw, (cout, cin, 3, 3), jnp.float32, -bound, bound)
        b = jax.random.uniform(kb, (cout,), jnp.float32, -bound, bound)
        return w, b

    w1, b1 = conv_init(ks[0], ks[1], n_in, n_out)
    w2, b2 = conv_init(ks[2], ks[3], n_out, n_out)
    g1 = 1.0 + 0.1 * jax.random.normal(ks[4], (n_out,), jnp.float32)
    be1 = 0.1 * jax.random.normal(ks[5], (n_out,), jnp.float32)
    g2 = 1.0 + 0.1 * jax.random.normal(ks[6], (n_out,), jnp.float32)
    be2 = 0.1 * jax.random.normal(ks[7], (n_out,), jnp.float32)
    return dict(w1=w1, b1=b1, g1=g1, be1=be1, w2=w2, b2=b2, g2=g2, be2=be2)


def subnet2conv_ref(x_nchw, p):
    """Pure-JAX reference (mirrors PyTorch semantics) for verification."""
    def block(x, w, b, g, be):
        y = jax.lax.conv_general_dilated(
            x, w, window_strides=(1, 1), padding=((1, 1), (1, 1)),
            dimension_numbers=("NCHW", "OIHW", "NCHW"),
        ) + b[None, :, None, None]
        m = y.mean(axis=(2, 3), keepdims=True)
        v = ((y - m) ** 2).mean(axis=(2, 3), keepdims=True)
        y = (y - m) / jnp.sqrt(v + 1e-5)
        y = y * g[None, :, None, None] + be[None, :, None, None]
        return jnp.maximum(y, 0.0)

    x = block(x_nchw, p["w1"], p["b1"], p["g1"], p["be1"])
    x = block(x, p["w2"], p["b2"], p["g2"], p["be2"])
    return x


if __name__ == "__main__":
    key = jax.random.PRNGKey(0)
    k_x, k_p = jax.random.split(key)

    N, C_IN, C_OUT, H, W = 2, 4, 8, 16, 16
    x = jax.random.normal(k_x, (N, C_IN, H, W), jnp.float32)
    params = init_params(k_p, C_IN, C_OUT)

    out = jax.jit(subnet2conv_forward)(x, params)
    out = jax.block_until_ready(out)

    ref = subnet2conv_ref(x, params)
    assert out.shape == (N, C_OUT, H, W)
    assert jnp.allclose(out, ref, atol=1e-4, rtol=1e-4), (
        float(jnp.max(jnp.abs(out - ref)))
    )
    # TODO(synk): Dropout2d is a no-op at p=0 (module default) and is elided.
    print("KERNEL_OK")
</pallas_src>

<mosaic_0001>
module attributes {stable_mosaic.version = 11 : i64} {
  func.func @_subnet2conv_kernel(%arg0: i32, %arg1: memref<1x16x64xf32, #tpu.memory_space<vmem>>, %arg2: memref<3x72x128xf32, #tpu.memory_space<vmem>>, %arg3: memref<3x144x128xf32, #tpu.memory_space<vmem>>, %arg4: memref<6x8xf32, #tpu.memory_space<vmem>>, %arg5: memref<1x16x128xf32, #tpu.memory_space<vmem>>, %arg6: memref<18x72xf32, #tpu.memory_space<vmem>>, %arg7: memref<18x144xf32, #tpu.memory_space<vmem>>) attributes {dimension_semantics = [#tpu.dimension_semantics<parallel>], iteration_bounds = array<i64: 2>, scalar_prefetch = 0 : i64, scratch_operands = 2 : i64, tpu.core_type = #tpu.core_type<tc>, window_params = [{transform_indices = @transform_0, window_bounds = array<i64: 1, 16, 64>}, {pipeline_mode = #tpu.pipeline_mode<synchronous>, transform_indices = @transform_1, window_bounds = array<i64: 3, 72, 128>}, {pipeline_mode = #tpu.pipeline_mode<synchronous>, transform_indices = @transform_2, window_bounds = array<i64: 3, 144, 128>}, {pipeline_mode = #tpu.pipeline_mode<synchronous>, transform_indices = @transform_3, window_bounds = array<i64: 6, 8>}, {transform_indices = @transform_4, window_bounds = array<i64: 1, 16, 128>}]} {
    %0 = tpu.iota {dimensions = array<i32: 0>} : vector<128x8xi32>
    %c8_i32 = arith.constant 8 : i32
    %c0_i32 = arith.constant 0 : i32
    %1 = arith.cmpi eq, %c8_i32, %c0_i32 : i32
    %c1_i32 = arith.constant 1 : i32
    %2 = arith.select %1, %c1_i32, %c8_i32 : i32
    %3 = vector.broadcast %2 : i32 to vector<128x8xi32>
    %4 = arith.remsi %0, %3 : vector<128x8xi32>
    %c0_i32_0 = arith.constant 0 : i32
    %5 = vector.broadcast %c0_i32_0 : i32 to vector<128x8xi32>
    %6 = arith.cmpi ne, %4, %5 : vector<128x8xi32>
    %c0_i32_1 = arith.constant 0 : i32
    %7 = vector.broadcast %c0_i32_1 : i32 to vector<128x8xi32>
    %8 = arith.cmpi slt, %4, %7 : vector<128x8xi32>
    %c0_i32_2 = arith.constant 0 : i32
    %9 = arith.cmpi slt, %2, %c0_i32_2 : i32
    %10 = vector.broadcast %9 : i1 to vector<128x8xi1>
    %11 = vector.broadcast %10 : vector<128x8xi1> to vector<128x8xi1>
    %12 = arith.xori %8, %11 : vector<128x8xi1>
    %13 = arith.andi %12, %6 : vector<128x8xi1>
    %14 = vector.broadcast %2 : i32 to vector<128x8xi32>
    %15 = arith.addi %4, %14 : vector<128x8xi32>
    %16 = arith.select %13, %15, %4 : vector<128x8xi1>, vector<128x8xi32>
    %17 = tpu.iota {dimensions = array<i32: 1>} : vector<128x8xi32>
    %18 = arith.cmpi eq, %16, %17 : vector<128x8xi32>
    %19 = arith.extui %18 : vector<128x8xi1> to vector<128x8xi32>
    %20 = arith.sitofp %19 : vector<128x8xi32> to vector<128x8xf32>
    %21 = tpu.iota {dimensions = array<i32: 1>} : vector<8x128xi32>
    %c8_i32_3 = arith.constant 8 : i32
    %c0_i32_4 = arith.constant 0 : i32
    %22 = arith.cmpi eq, %c8_i32_3, %c0_i32_4 : i32
    %c1_i32_5 = arith.constant 1 : i32
    %23 = arith.select %22, %c1_i32_5, %c8_i32_3 : i32
    %24 = vector.broadcast %23 : i32 to vector<8x128xi32>
    %25 = arith.remsi %21, %24 : vector<8x128xi32>
    %c0_i32_6 = arith.constant 0 : i32
    %26 = vector.broadcast %c0_i32_6 : i32 to vector<8x128xi32>
    %27 = arith.cmpi ne, %25, %26 : vector<8x128xi32>
    %c0_i32_7 = arith.constant 0 : i32
    %28 = vector.broadcast %c0_i32_7 : i32 to vector<8x128xi32>
    %29 = arith.cmpi slt, %25, %28 : vector<8x128xi32>
    %c0_i32_8 = arith.constant 0 : i32
    %30 = arith.cmpi slt, %23, %c0_i32_8 : i32
    %31 = vector.broadcast %30 : i1 to vector<8x128xi1>
    %32 = vector.broadcast %31 : vector<8x128xi1> to vector<8x128xi1>
    %33 = arith.xori %29, %32 : vector<8x128xi1>
    %34 = arith.andi %33, %27 : vector<8x128xi1>
    %35 = vector.broadcast %23 : i32 to vector<8x128xi32>
    %36 = arith.addi %25, %35 : vector<8x128xi32>
    %37 = arith.select %34, %36, %25 : vector<8x128xi1>, vector<8x128xi32>
    %38 = tpu.iota {dimensions = array<i32: 0>} : vector<8x128xi32>
    %39 = arith.cmpi eq, %37, %38 : vector<8x128xi32>
    %40 = arith.extui %39 : vector<8x128xi1> to vector<8x128xi32>
    %41 = arith.sitofp %40 : vector<8x128xi32> to vector<8x128xf32>
    %cst = arith.constant 0.000000e+00 : f32
    %42 = vector.broadcast %cst : f32 to vector<18x72xf32>
    %c0 = arith.constant 0 : index
    %c0_9 = arith.constant 0 : index
    %43 = vector.load %arg6[%c0, %c0_9] : memref<18x72xf32, #tpu.memory_space<vmem>>, vector<18x72xf32>
    tpu.vector_store %arg6[%c0, %c0_9], %42 {strides = array<i32>} : memref<18x72xf32, #tpu.memory_space<vmem>>, vector<18x72xf32>,
    %c0_10 = arith.constant 0 : index
    %c0_11 = arith.constant 0 : index
    %c0_12 = arith.constant 0 : index
    %44 = vector.load %arg1[%c0_10, %c0_11, %c0_12] : memref<1x16x64xf32, #tpu.memory_space<vmem>>, vector<1x16x64xf32>
    %45 = vector.shape_cast %44 : vector<1x16x64xf32> to vector<16x64xf32>
    %c1 = arith.constant 1 : index
    %c4 = arith.constant 4 : index
    %46 = vector.load %arg6[%c1, %c4] : memref<18x72xf32, #tpu.memory_space<vmem>>, vector<16x64xf32>
    tpu.vector_store %arg6[%c1, %c4], %45 {strides = array<i32>} : memref<18x72xf32, #tpu.memory_space<vmem>>, vector<16x64xf32>,
    %c0_13 = arith.constant 0 : index
    %c0_14 = arith.constant 0 : index
    %47 = vector.load %arg4[%c0_13, %c0_14] : memref<6x8xf32, #tpu.memory_space<vmem>>, vector<1x8xf32>
    %c1_15 = arith.constant 1 : index
    %c0_16 = arith.constant 0 : index
    %48 = vector.load %arg4[%c1_15, %c0_16] : memref<6x8xf32, #tpu.memory_space<vmem>>, vector<1x8xf32>
    %c2 = arith.constant 2 : index
    %c0_17 = arith.constant 0 : index
    %49 = vector.load %arg4[%c2, %c0_17] : memref<6x8xf32, #tpu.memory_space<vmem>>, vector<1x8xf32>
    %c0_18 = arith.constant 0 : index
    %c0_19 = arith.constant 0 : index
    %50 = vector.load %arg6[%c0_18, %c0_19] : memref<18x72xf32, #tpu.memory_space<vmem>>, vector<16x72xf32>
    %c0_20 = arith.constant 0 : index
    %c0_21 = arith.constant 0 : index
    %c0_22 = arith.constant 0 : index
    %51 = vector.load %arg2[%c0_20, %c0_21, %c0_22] : memref<3x72x128xf32, #tpu.memory_space<vmem>>, vector<1x72x128xf32>
    %52 = vector.shape_cast %51 : vector<1x72x128xf32> to vector<72x128xf32>
    %cst_23 = arith.constant dense<0.000000e+00> : vector<16x128xf32>
    %53 = tpu.matmul %50, %52, %cst_23 {dimension_numbers = #tpu.dot_dimension_numbers<[1], [0], [0], [1], [0, 0, 1, 1], [], []>} : vector<16x72xf32>, vector<72x128xf32>, vector<16x128xf32> -> vector<16x128xf32>
    %c1_24 = arith.constant 1 : index
    %c0_25 = arith.constant 0 : index
    %54 = vector.load %arg6[%c1_24, %c0_25] : memref<18x72xf32, #tpu.memory_space<vmem>>, vector<16x72xf32>
    %c1_26 = arith.constant 1 : index
    %c0_27 = arith.constant 0 : index
    %c0_28 = arith.constant 0 : index
    %55 = vector.load %arg2[%c1_26, %c0_27, %c0_28] : memref<3x72x128xf32, #tpu.memory_space<vmem>>, vector<1x72x128xf32>
    %56 = vector.shape_cast %55 : vector<1x72x128xf32> to vector<72x128xf32>
    %cst_29 = arith.constant dense<0.000000e+00> : vector<16x128xf32>
    %57 = tpu.matmul %54, %56, %cst_29 {dimension_numbers = #tpu.dot_dimension_numbers<[1], [0], [0], [1], [0, 0, 1, 1], [], []>} : vector<16x72xf32>, vector<72x128xf32>, vector<16x128xf32> -> vector<16x128xf32>
    %58 = arith.addf %53, %57 : vector<16x128xf32>
    %c2_30 = arith.constant 2 : index
    %c0_31 = arith.constant 0 : index
    %59 = vector.load %arg6[%c2_30, %c0_31] : memref<18x72xf32, #tpu.memory_space<vmem>>, vector<16x72xf32>
    %c2_32 = arith.constant 2 : index
    %c0_33 = arith.constant 0 : index
    %c0_34 = arith.constant 0 : index
    %60 = vector.load %arg2[%c2_32, %c0_33, %c0_34] : memref<3x72x128xf32, #tpu.memory_space<vmem>>, vector<1x72x128xf32>
    %61 = vector.shape_cast %60 : vector<1x72x128xf32> to vector<72x128xf32>
    %cst_35 = arith.constant dense<0.000000e+00> : vector<16x128xf32>
    %62 = tpu.matmul %59, %61, %cst_35 {dimension_numbers = #tpu.dot_dimension_numbers<[1], [0], [0], [1], [0, 0, 1, 1], [], []>} : vector<16x72xf32>, vector<72x128xf32>, vector<16x128xf32> -> vector<16x128xf32>
    %63 = arith.addf %58, %62 : vector<16x128xf32>
    %cst_36 = arith.constant dense<0.000000e+00> : vector<1x128xf32>
    %64 = tpu.matmul %47, %41, %cst_36 {dimension_numbers = #tpu.dot_dimension_numbers<[1], [0], [0], [1], [0, 0, 1, 1], [], []>} : vector<1x8xf32>, vector<8x128xf32>, vector<1x128xf32> -> vector<1x128xf32>
    %65 = vector.broadcast %64 : vector<1x128xf32> to vector<16x128xf32>
    %66 = arith.addf %63, %65 : vector<16x128xf32>
    %cst_37 = arith.constant dense<0.000000e+00> : vector<128xf32>
    %67 = vector.multi_reduction <add>, %66, %cst_37 [0] : vector<16x128xf32> to vector<128xf32>
    %68 = vector.shape_cast %67 : vector<128xf32> to vector<1x128xf32>
    %69 = arith.mulf %66, %66 : vector<16x128xf32>
    %cst_38 = arith.constant dense<0.000000e+00> : vector<128xf32>
    %70 = vector.multi_reduction <add>, %69, %cst_38 [0] : vector<16x128xf32> to vector<128xf32>
    %71 = vector.shape_cast %70 : vector<128xf32> to vector<1x128xf32>
    %cst_39 = arith.constant dense<0.000000e+00> : vector<1x8xf32>
    %72 = tpu.matmul %68, %20, %cst_39 {dimension_numbers = #tpu.dot_dimension_numbers<[1], [0], [0], [1], [0, 0, 1, 1], [], []>} : vector<1x128xf32>, vector<128x8xf32>, vector<1x8xf32> -> vector<1x8xf32>
    %cst_40 = arith.constant 3.906250e-03 : f32
    %73 = vector.broadcast %cst_40 : f32 to vector<1x8xf32>
    %74 = arith.mulf %72, %73 : vector<1x8xf32>
    %cst_41 = arith.constant dense<0.000000e+00> : vector<1x8xf32>
    %75 = tpu.matmul %71, %20, %cst_41 {dimension_numbers = #tpu.dot_dimension_numbers<[1], [0], [0], [1], [0, 0, 1, 1], [], []>} : vector<1x128xf32>, vector<128x8xf32>, vector<1x8xf32> -> vector<1x8xf32>
    %cst_42 = arith.constant 3.906250e-03 : f32
    %76 = vector.broadcast %cst_42 : f32 to vector<1x8xf32>
    %77 = arith.mulf %75, %76 : vector<1x8xf32>
    %78 = arith.mulf %74, %74 : vector<1x8xf32>
    %79 = arith.subf %77, %78 : vector<1x8xf32>
    %cst_43 = arith.constant 0.000000e+00 : f32
    %80 = vector.broadcast %cst_43 : f32 to vector<1x8xf32>
    %81 = arith.maximumf %79, %80 : vector<1x8xf32>
    %cst_44 = arith.constant 9.99999974E-6 : f32
    %82 = vector.broadcast %cst_44 : f32 to vector<1x8xf32>
    %83 = arith.addf %81, %82 : vector<1x8xf32>
    %84 = math.rsqrt %83 : vector<1x8xf32>
    %85 = arith.mulf %48, %84 : vector<1x8xf32>
    %86 = arith.mulf %74, %85 : vector<1x8xf32>
    %87 = arith.subf %49, %86 : vector<1x8xf32>
    %cst_45 = arith.constant dense<0.000000e+00> : vector<1x128xf32>
    %88 = tpu.matmul %85, %41, %cst_45 {dimension_numbers = #tpu.dot_dimension_numbers<[1], [0], [0], [1], [0, 0, 1, 1], [], []>} : vector<1x8xf32>, vector<8x128xf32>, vector<1x128xf32> -> vector<1x128xf32>
    %cst_46 = arith.constant dense<0.000000e+00> : vector<1x128xf32>
    %89 = tpu.matmul %87, %41, %cst_46 {dimension_numbers = #tpu.dot_dimension_numbers<[1], [0], [0], [1], [0, 0, 1, 1], [], []>} : vector<1x8xf32>, vector<8x128xf32>, vector<1x128xf32> -> vector<1x128xf32>
    %90 = vector.broadcast %88 : vector<1x128xf32> to vector<16x128xf32>
    %91 = arith.mulf %66, %90 : vector<16x128xf32>
    %92 = vector.broadcast %89 : vector<1x128xf32> to vector<16x128xf32>
    %93 = arith.addf %91, %92 : vector<16x128xf32>
    %cst_47 = arith.constant 0.000000e+00 : f32
    %94 = vector.broadcast %cst_47 : f32 to vector<16x128xf32>
    %95 = arith.maximumf %93, %94 : vector<16x128xf32>
    %cst_48 = arith.constant 0.000000e+00 : f32
    %96 = vector.broadcast %cst_48 : f32 to vector<18x144xf32>
    %c0_49 = arith.constant 0 : index
    %c0_50 = arith.constant 0 : index
    %97 = vector.load %arg7[%c0_49, %c0_50] : memref<18x144xf32, #tpu.memory_space<vmem>>, vector<18x144xf32>
    tpu.vector_store %arg7[%c0_49, %c0_50], %96 {strides = array<i32>} : memref<18x144xf32, #tpu.memory_space<vmem>>, vector<18x144xf32>,
    %c1_51 = arith.constant 1 : index
    %c8 = arith.constant 8 : index
    %98 = vector.load %arg7[%c1_51, %c8] : memref<18x144xf32, #tpu.memory_space<vmem>>, vector<16x128xf32>
    tpu.vector_store %arg7[%c1_51, %c8], %95 {strides = array<i32>} : memref<18x144xf32, #tpu.memory_space<vmem>>, vector<16x128xf32>,
    %c3 = arith.constant 3 : index
    %c0_52 = arith.constant 0 : index
    %99 = vector.load %arg4[%c3, %c0_52] : memref<6x8xf32, #tpu.memory_space<vmem>>, vector<1x8xf32>
    %c4_53 = arith.constant 4 : index
    %c0_54 = arith.constant 0 : index
    %100 = vector.load %arg4[%c4_53, %c0_54] : memref<6x8xf32, #tpu.memory_space<vmem>>, vector<1x8xf32>
    %c5 = arith.constant 5 : index
    %c0_55 = arith.constant 0 : index
    %101 = vector.load %arg4[%c5, %c0_55] : memref<6x8xf32, #tpu.memory_space<vmem>>, vector<1x8xf32>
    %c0_56 = arith.constant 0 : index
    %c0_57 = arith.constant 0 : index
    %102 = vector.load %arg7[%c0_56, %c0_57] : memref<18x144xf32, #tpu.memory_space<vmem>>, vector<16x144xf32>
    %c0_58 = arith.constant 0 : index
    %c0_59 = arith.constant 0 : index
    %c0_60 = arith.constant 0 : index
    %103 = vector.load %arg3[%c0_58, %c0_59, %c0_60] : memref<3x144x128xf32, #tpu.memory_space<vmem>>, vector<1x144x128xf32>
    %104 = vector.shape_cast %103 : vector<1x144x128xf32> to vector<144x128xf32>
    %cst_61 = arith.constant dense<0.000000e+00> : vector<16x128xf32>
    %105 = tpu.matmul %102, %104, %cst_61 {dimension_numbers = #tpu.dot_dimension_numbers<[1], [0], [0], [1], [0, 0, 1, 1], [], []>} : vector<16x144xf32>, vector<144x128xf32>, vector<16x128xf32> -> vector<16x128xf32>
    %c1_62 = arith.constant 1 : index
    %c0_63 = arith.constant 0 : index
    %106 = vector.load %arg7[%c1_62, %c0_63] : memref<18x144xf32, #tpu.memory_space<vmem>>, vector<16x144xf32>
    %c1_64 = arith.constant 1 : index
    %c0_65 = arith.constant 0 : index
    %c0_66 = arith.constant 0 : index
    %107 = vector.load %arg3[%c1_64, %c0_65, %c0_66] : memref<3x144x128xf32, #tpu.memory_space<vmem>>, vector<1x144x128xf32>
    %108 = vector.shape_cast %107 : vector<1x144x128xf32> to vector<144x128xf32>
    %cst_67 = arith.constant dense<0.000000e+00> : vector<16x128xf32>
    %109 = tpu.matmul %106, %108, %cst_67 {dimension_numbers = #tpu.dot_dimension_numbers<[1], [0], [0], [1], [0, 0, 1, 1], [], []>} : vector<16x144xf32>, vector<144x128xf32>, vector<16x128xf32> -> vector<16x128xf32>
    %110 = arith.addf %105, %109 : vector<16x128xf32>
    %c2_68 = arith.constant 2 : index
    %c0_69 = arith.constant 0 : index
    %111 = vector.load %arg7[%c2_68, %c0_69] : memref<18x144xf32, #tpu.memory_space<vmem>>, vector<16x144xf32>
    %c2_70 = arith.constant 2 : index
    %c0_71 = arith.constant 0 : index
    %c0_72 = arith.constant 0 : index
    %112 = vector.load %arg3[%c2_70, %c0_71, %c0_72] : memref<3x144x128xf32, #tpu.memory_space<vmem>>, vector<1x144x128xf32>
    %113 = vector.shape_cast %112 : vector<1x144x128xf32> to vector<144x128xf32>
    %cst_73 = arith.constant dense<0.000000e+00> : vector<16x128xf32>
    %114 = tpu.matmul %111, %113, %cst_73 {dimension_numbers = #tpu.dot_dimension_numbers<[1], [0], [0], [1], [0, 0, 1, 1], [], []>} : vector<16x144xf32>, vector<144x128xf32>, vector<16x128xf32> -> vector<16x128xf32>
    %115 = arith.addf %110, %114 : vector<16x128xf32>
    %cst_74 = arith.constant dense<0.000000e+00> : vector<1x128xf32>
    %116 = tpu.matmul %99, %41, %cst_74 {dimension_numbers = #tpu.dot_dimension_numbers<[1], [0], [0], [1], [0, 0, 1, 1], [], []>} : vector<1x8xf32>, vector<8x128xf32>, vector<1x128xf32> -> vector<1x128xf32>
    %117 = vector.broadcast %116 : vector<1x128xf32> to vector<16x128xf32>
    %118 = arith.addf %115, %117 : vector<16x128xf32>
    %cst_75 = arith.constant dense<0.000000e+00> : vector<128xf32>
    %119 = vector.multi_reduction <add>, %118, %cst_75 [0] : vector<16x128xf32> to vector<128xf32>
    %120 = vector.shape_cast %119 : vector<128xf32> to vector<1x128xf32>
    %121 = arith.mulf %118, %118 : vector<16x128xf32>
    %cst_76 = arith.constant dense<0.000000e+00> : vector<128xf32>
    %122 = vector.multi_reduction <add>, %121, %cst_76 [0] : vector<16x128xf32> to vector<128xf32>
    %123 = vector.shape_cast %122 : vector<128xf32> to vector<1x128xf32>
    %cst_77 = arith.constant dense<0.000000e+00> : vector<1x8xf32>
    %124 = tpu.matmul %120, %20, %cst_77 {dimension_numbers = #tpu.dot_dimension_numbers<[1], [0], [0], [1], [0, 0, 1, 1], [], []>} : vector<1x128xf32>, vector<128x8xf32>, vector<1x8xf32> -> vector<1x8xf32>
    %cst_78 = arith.constant 3.906250e-03 : f32
    %125 = vector.broadcast %cst_78 : f32 to vector<1x8xf32>
    %126 = arith.mulf %124, %125 : vector<1x8xf32>
    %cst_79 = arith.constant dense<0.000000e+00> : vector<1x8xf32>
    %127 = tpu.matmul %123, %20, %cst_79 {dimension_numbers = #tpu.dot_dimension_numbers<[1], [0], [0], [1], [0, 0, 1, 1], [], []>} : vector<1x128xf32>, vector<128x8xf32>, vector<1x8xf32> -> vector<1x8xf32>
    %cst_80 = arith.constant 3.906250e-03 : f32
    %128 = vector.broadcast %cst_80 : f32 to vector<1x8xf32>
    %129 = arith.mulf %127, %128 : vector<1x8xf32>
    %130 = arith.mulf %126, %126 : vector<1x8xf32>
    %131 = arith.subf %129, %130 : vector<1x8xf32>
    %cst_81 = arith.constant 0.000000e+00 : f32
    %132 = vector.broadcast %cst_81 : f32 to vector<1x8xf32>
    %133 = arith.maximumf %131, %132 : vector<1x8xf32>
    %cst_82 = arith.constant 9.99999974E-6 : f32
    %134 = vector.broadcast %cst_82 : f32 to vector<1x8xf32>
    %135 = arith.addf %133, %134 : vector<1x8xf32>
    %136 = math.rsqrt %135 : vector<1x8xf32>
    %137 = arith.mulf %100, %136 : vector<1x8xf32>
    %138 = arith.mulf %126, %137 : vector<1x8xf32>
    %139 = arith.subf %101, %138 : vector<1x8xf32>
    %cst_83 = arith.constant dense<0.000000e+00> : vector<1x128xf32>
    %140 = tpu.matmul %137, %41, %cst_83 {dimension_numbers = #tpu.dot_dimension_numbers<[1], [0], [0], [1], [0, 0, 1, 1], [], []>} : vector<1x8xf32>, vector<8x128xf32>, vector<1x128xf32> -> vector<1x128xf32>
    %cst_84 = arith.constant dense<0.000000e+00> : vector<1x128xf32>
    %141 = tpu.matmul %139, %41, %cst_84 {dimension_numbers = #tpu.dot_dimension_numbers<[1], [0], [0], [1], [0, 0, 1, 1], [], []>} : vector<1x8xf32>, vector<8x128xf32>, vector<1x128xf32> -> vector<1x128xf32>
    %142 = vector.broadcast %140 : vector<1x128xf32> to vector<16x128xf32>
    %143 = arith.mulf %118, %142 : vector<16x128xf32>
    %144 = vector.broadcast %141 : vector<1x128xf32> to vector<16x128xf32>
    %145 = arith.addf %143, %144 : vector<16x128xf32>
    %cst_85 = arith.constant 0.000000e+00 : f32
    %146 = vector.broadcast %cst_85 : f32 to vector<16x128xf32>
    %147 = arith.maximumf %145, %146 : vector<16x128xf32>
    %148 = vector.shape_cast %147 : vector<16x128xf32> to vector<1x16x128xf32>
    %c0_86 = arith.constant 0 : index
    %c0_87 = arith.constant 0 : index
    %c0_88 = arith.constant 0 : index
    %149 = vector.load %arg5[%c0_86, %c0_87, %c0_88] : memref<1x16x128xf32, #tpu.memory_space<vmem>>, vector<1x16x128xf32>
    tpu.vector_store %arg5[%c0_86, %c0_87, %c0_88], %148 {strides = array<i32>} : memref<1x16x128xf32, #tpu.memory_space<vmem>>, vector<1x16x128xf32>,
    return
  }
  func.func @transform_0(%arg0: i32) -> (i32, i32, i32) {
    %c0_i32 = arith.constant 0 : i32
    %c0_i32_0 = arith.constant 0 : i32
    %c0_i32_1 = arith.constant 0 : i32
    return %arg0, %c0_i32, %c0_i32_0 : i32, i32, i32
  }
  func.func @transform_1(%arg0: i32) -> (i32, i32, i32) {
    %c0_i32 = arith.constant 0 : i32
    %c0_i32_0 = arith.constant 0 : i32
    %c0_i32_1 = arith.constant 0 : i32
    %c0_i32_2 = arith.constant 0 : i32
    return %c0_i32, %c0_i32_0, %c0_i32_1 : i32, i32, i32
  }
  func.func @transform_2(%arg0: i32) -> (i32, i32, i32) {
    %c0_i32 = arith.constant 0 : i32
    %c0_i32_0 = arith.constant 0 : i32
    %c0_i32_1 = arith.constant 0 : i32
    %c0_i32_2 = arith.constant 0 : i32
    return %c0_i32, %c0_i32_0, %c0_i32_1 : i32, i32, i32
  }
  func.func @transform_3(%arg0: i32) -> (i32, i32) {
    %c0_i32 = arith.constant 0 : i32
    %c0_i32_0 = arith.constant 0 : i32
    %c0_i32_1 = arith.constant 0 : i32
    return %c0_i32, %c0_i32_0 : i32, i32
  }
  func.func @transform_4(%arg0: i32) -> (i32, i32, i32) {
    %c0_i32 = arith.constant 0 : i32
    %c0_i32_0 = arith.constant 0 : i32
    %c0_i32_1 = arith.constant 0 : i32
    return %arg0, %c0_i32, %c0_i32_0 : i32, i32, i32
  }
}

</mosaic_0001>

<llo_original>
// kernel: subnet2conv_forward.1
$region0: #{subnet2conv_forward.1}
  #allocation0 [shape = 'u32[]', space=smem, size = 0x4, offset = 0x4, fixed_abs, tag = 'smem constant byte address 0x4 - core index']
  #allocation1 [shape = 'u32[144,128]{1,0:T(1,128)}', space=vmem, size = 0x12000, scoped, tag = 'internal scratch']
  #allocation2 [shape = 'f32[18,72]{1,0:T(8,128)}', space=vmem, size = 0x3000, scoped, tag = 'scratch operand']
  #allocation3 [shape = 'f32[18,144]{1,0:T(8,128)}', space=vmem, size = 0x6000, scoped, tag = 'scratch operand']
  %s0 = inlined_call_operand.vmem [shape: f32[2,16,64], index: 0, kind: input, shape index: {}]
  %s1 = inlined_call_operand.vmem [shape: f32[3,72,128], index: 1, kind: input, shape index: {}]
  %s2 = inlined_call_operand.vmem [shape: f32[3,144,128], index: 2, kind: input, shape index: {}]
  %s3 = inlined_call_operand.vmem [shape: f32[6,8], index: 3, kind: input, shape index: {}]
  %s4 = inlined_call_operand.vmem [shape: f32[2,16,128], index: 4, kind: output, shape index: {}]
  %s5 = sld [smem:[#allocation0]]
  $region49: #{subnet2conv_forward.1} parent=0
    _
  %s7 = ssub.s32 1, %s5
  %s8 = scalar_select 0, %s7, %s5
  loop: start=0, step=1, limit=4
  $region2: #{subnet2conv_forward.1} parent=0 // loop_pre_header
    _
  $region3: #{subnet2conv_forward.1} parent=0 // loop_header
    %s10 = sphi 0, %s14
    %p11 = scmp.ge.s32.totalorder %s10, 4
    %s20 = sphi 0, %s22
    %s23 = sphi 0, %s20
    %s24 = sphi 0, %s23
    %s40 = sphi 0, %s24
    %s44 = sphi 0, %s44
    %s46 = sphi 0, %s44
    %s47 = sphi 0, %s46
    %s61 = sphi 0, %s47
    %s65 = sphi 0, %s65
    %s67 = sphi 0, %s65
    %s68 = sphi 0, %s67
    %s82 = sphi 0, %s68
    %s86 = sphi 0, %s86
    %s88 = sphi 0, %s86
    %s89 = sphi 0, %s88
    %s103 = sphi 0, %s89
    %s109 = sphi 0, %s111
    %s112 = sphi 0, %s109
    %s113 = sphi 0, %s112
    %s129 = sphi 0, %s113
  $region4: #{subnet2conv_forward.1} parent=0 // loop_header_branch
    %13 = sbr.rel (%p11) target = $region8
  $region5: #{subnet2conv_forward.1} parent=0 // loop_body
    %s15 = ssub.s32 %s10, 1
    %s16 = ssub.s32 %s10, 2
    %s17 = sadd.s32 %s10, 1
    %s18 = ssub.s32 %s10, %s17
    %p19 = scmp.eq.s32.totalorder %s18, 0
    %s21 = sadd.s32 %s20, 1
    %s22 = scalar_select %p19, %s20, %s21
    %p25 = pneg %p19
    %p26 = scmp.eq.s32.totalorder %s10, 1
    %p27 = por %p25, %p26
    %p28 = scmp.ne.s32.totalorder %s20, %s23
    %p29 = scmp.eq.s32.totalorder %s10, 0
    %p30 = por %p28, %p29
    %p31 = scmp.ne.s32.totalorder %s20, %s23
    %p32 = scmp.eq.s32.totalorder %s15, 1
    %p33 = por %p31, %p32
    %p34 = scmp.ne.s32.totalorder %s23, %s24
    %p35 = scmp.eq.s32.totalorder %s15, 0
    %p36 = por %p34, %p35
    %p37 = scmp.ne.s32.totalorder %s23, %s24
    %p38 = scmp.eq.s32.totalorder %s16, 1
    %p39 = por %p37, %p38
    %p41 = scmp.ne.s32.totalorder %s24, %s40
    %p42 = scmp.eq.s32.totalorder %s16, 0
    %p43 = por %p41, %p42
    %s45 = sadd.s32 %s44, 1
    %p48 = scmp.eq.s32.totalorder %s10, 1
    %p49 = scmp.ne.s32.totalorder %s44, %s46
    %p50 = scmp.eq.s32.totalorder %s10, 0
    %p51 = por %p49, %p50
    %p52 = scmp.ne.s32.totalorder %s44, %s46
    %p53 = scmp.eq.s32.totalorder %s15, 1
    %p54 = por %p52, %p53
    %p55 = scmp.ne.s32.totalorder %s46, %s47
    %p56 = scmp.eq.s32.totalorder %s15, 0
    %p57 = por %p55, %p56
    %p58 = scmp.ne.s32.totalorder %s46, %s47
    %p59 = scmp.eq.s32.totalorder %s16, 1
    %p60 = por %p58, %p59
    %p62 = scmp.ne.s32.totalorder %s47, %s61
    %p63 = scmp.eq.s32.totalorder %s16, 0
    %p64 = por %p62, %p63
    %s66 = sadd.s32 %s65, 1
    %p69 = scmp.eq.s32.totalorder %s10, 1
    %p70 = scmp.ne.s32.totalorder %s65, %s67
    %p71 = scmp.eq.s32.totalorder %s10, 0
    %p72 = por %p70, %p71
    %p73 = scmp.ne.s32.totalorder %s65, %s67
    %p74 = scmp.eq.s32.totalorder %s15, 1
    %p75 = por %p73, %p74
    %p76 = scmp.ne.s32.totalorder %s67, %s68
    %p77 = scmp.eq.s32.totalorder %s15, 0
    %p78 = por %p76, %p77
    %p79 = scmp.ne.s32.totalorder %s67, %s68
    %p80 = scmp.eq.s32.totalorder %s16, 1
    %p81 = por %p79, %p80
    %p83 = scmp.ne.s32.totalorder %s68, %s82
    %p84 = scmp.eq.s32.totalorder %s16, 0
    %p85 = por %p83, %p84
    %s87 = sadd.s32 %s86, 1
    %p90 = scmp.eq.s32.totalorder %s10, 1
    %p91 = scmp.ne.s32.totalorder %s86, %s88
    %p92 = scmp.eq.s32.totalorder %s10, 0
    %p93 = por %p91, %p92
    %p94 = scmp.ne.s32.totalorder %s86, %s88
    %p95 = scmp.eq.s32.totalorder %s15, 1
    %p96 = por %p94, %p95
    %p97 = scmp.ne.s32.totalorder %s88, %s89
    %p98 = scmp.eq.s32.totalorder %s15, 0
    %p99 = por %p97, %p98
    %p100 = scmp.ne.s32.totalorder %s88, %s89
    %p101 = scmp.eq.s32.totalorder %s16, 1
    %p102 = por %p100, %p101
    %p104 = scmp.ne.s32.totalorder %s89, %s103
    %p105 = scmp.eq.s32.totalorder %s16, 0
    %p106 = por %p104, %p105
    %s107 = ssub.s32 %s10, %s17
    %p108 = scmp.eq.s32.totalorder %s107, 0
    %s110 = sadd.s32 %s109, 1
    %s111 = scalar_select %p108, %s109, %s110
    %p114 = pneg %p108
    %p115 = scmp.eq.s32.totalorder %s10, 1
    %p116 = por %p114, %p115
    %p117 = scmp.ne.s32.totalorder %s109, %s112
    %p118 = scmp.eq.s32.totalorder %s10, 0
    %p119 = por %p117, %p118
    %p120 = scmp.ne.s32.totalorder %s109, %s112
    %p121 = scmp.eq.s32.totalorder %s15, 1
    %p122 = por %p120, %p121
    %p123 = scmp.ne.s32.totalorder %s112, %s113
    %p124 = scmp.eq.s32.totalorder %s15, 0
    %p125 = por %p123, %p124
    %p126 = scmp.ne.s32.totalorder %s112, %s113
    %p127 = scmp.eq.s32.totalorder %s16, 1
    %p128 = por %p126, %p127
    %p130 = scmp.ne.s32.totalorder %s113, %s129
    %p131 = scmp.eq.s32.totalorder %s16, 0
    %p132 = por %p130, %p131
    %p133 = scmp.le.s32.totalorder 1, %s10
    %p134 = scmp.lt.s32.totalorder %s10, 3
    %p135 = pnand %p133, %p134
    %p136 = pneg %p135
    // Predicated region
    $region9: #{subnet2conv_forward.1} parent=5 // pred_check
      _
    $region10: #{subnet2conv_forward.1} parent=5 // pred_check_branch
      %138 = sbr.rel (%p135) target = $region12
    $region11: #{subnet2conv_forward.1} parent=5 // pred_region
      %s139 = ssub.s32 %s10, 1
      // Predicated region
      $region13: #{subnet2conv_forward.1} parent=11 // pred_check
        %p140 = pneg %p57
      $region14: #{subnet2conv_forward.1} parent=11 // pred_check_branch
        %142 = sbr.rel (%p140) target = $region16
      $region15: #{subnet2conv_forward.1} parent=11 // pred_region
        _
      $region16: #{subnet2conv_forward.1} parent=11 // pred_fallthru
        _
      // Predicated region
      $region17: #{subnet2conv_forward.1} parent=11 // pred_check
        %p143 = pneg %p78
      $region18: #{subnet2conv_forward.1} parent=11 // pred_check_branch
        %145 = sbr.rel (%p143) target = $region20
      $region19: #{subnet2conv_forward.1} parent=11 // pred_region
        _
      $region20: #{subnet2conv_forward.1} parent=11 // pred_fallthru
        _
      // Predicated region
      $region21: #{subnet2conv_forward.1} parent=11 // pred_check
        %p146 = pneg %p99
      $region22: #{subnet2conv_forward.1} parent=11 // pred_check_branch
        %148 = sbr.rel (%p146) target = $region24
      $region23: #{subnet2conv_forward.1} parent=11 // pred_region
        _
      $region24: #{subnet2conv_forward.1} parent=11 // pred_fallthru
        _
    $region12: #{subnet2conv_forward.1} parent=5 // pred_fallthru
      _
    %p149 = scmp.lt.s32.totalorder %s10, 2
    // Predicated region
    $region25: #{subnet2conv_forward.1} parent=5 // pred_check
      %p150 = pneg %p149
    $region26: #{subnet2conv_forward.1} parent=5 // pred_check_branch
      %152 = sbr.rel (%p150) target = $region28
    $region27: #{subnet2conv_forward.1} parent=5 // pred_region
      // Predicated region
      $region29: #{subnet2conv_forward.1} parent=27 // pred_check
        %p153 = pneg %p30
      $region30: #{subnet2conv_forward.1} parent=27 // pred_check_branch
        %155 = sbr.rel (%p153) target = $region32
      $region31: #{subnet2conv_forward.1} parent=27 // pred_region
        %p156 = scmp.lt.s32.totalorder %s10, 1
        %s157 = scalar_select %p156, %s10, 1
        %s158 = smul.addr %s157, 2
        %s159 = smul.addr %s158, 8
        %s160 = scalar_lea.vmem %s0, %s159
      $region32: #{subnet2conv_forward.1} parent=27 // pred_fallthru
        _
    $region28: #{subnet2conv_forward.1} parent=5 // pred_fallthru
      _
    %p161 = scmp.le.s32.totalorder 1, %s10
    %p162 = scmp.lt.s32.totalorder %s10, 3
    %p163 = pnand %p161, %p162
    %p164 = pneg %p163
    // Predicated region
    $region33: #{subnet2conv_forward.1} parent=5 // pred_check
      _
    $region34: #{subnet2conv_forward.1} parent=5 // pred_check_branch
      %166 = sbr.rel (%p163) target = $region36
    $region35: #{subnet2conv_forward.1} parent=5 // pred_region
      %s167 = ssub.s32 %s10, 1
      %p168 = scmp.lt.s32.totalorder %s15, 1
      %s169 = scalar_select %p168, %s15, 1
      %s170 = smul.addr %s169, 2
      %s171 = smul.addr %s170, 8
      %s172 = scalar_lea.vmem %s0, %s171
      %p173 = pneg %p36
      %p174 = pneg %p33
      %p175 = pneg %p57
      %p176 = pneg %p54
      %p177 = pneg %p78
      %p178 = pneg %p75
      %p179 = pneg %p99
      %p180 = pneg %p96
      %p181 = pneg %p125
      %p182 = pneg %p122
      %p183 = scmp.lt.s32.totalorder %s15, 1
      %s184 = scalar_select %p183, %s15, 1
      %s185 = smul.addr %s184, 2
      %s186 = smul.addr %s185, 8
      %s187 = scalar_lea.vmem %s4, %s186
      %p188 = scmp.lt.s32.totalorder %s15, 1
      %s189 = scalar_select %p188, %s15, 1
      %s190 = smul.addr %s189, 2
      %s191 = smul.addr %s190, 8
      %s192 = scalar_lea.vmem %s0, %s191
      %p193 = scmp.lt.s32.totalorder %s15, 1
      %s194 = scalar_select %p193, %s15, 1
      %s195 = smul.addr %s194, 2
      %s196 = smul.addr %s195, 8
      %s197 = scalar_lea.vmem %s4, %s196
      %v198 = vlaneseq
      %v199 = vshrl.u32 %v198, 7
      %v200 = vadd.s32 %v199, 8
      %v201 = vadd.s32 %v199, 16
      %v202 = vadd.s32 %v199, 24
      %v203 = vadd.s32 %v199, 32
      %v204 = vadd.s32 %v199, 40
      %v205 = vadd.s32 %v199, 48
      %v206 = vadd.s32 %v199, 56
      %v207 = vadd.s32 %v199, 64
      %v208 = vadd.s32 %v199, 72
      %v209 = vadd.s32 %v199, 80
      %v210 = vadd.s32 %v199, 88
      %v211 = vadd.s32 %v199, 96
      %v212 = vadd.s32 %v199, 104
      %v213 = vadd.s32 %v199, 112
      %v214 = vadd.s32 %v199, 120
      %vm215 = vcmp.lt.s32.totalorder %v199, 0
      %v216 = vsub.s32 0, %v199
      %v217 = vsel %vm215, %v216, %v199
      %v218 = vshrl.u32 %v217, 3
      %v219 = vand.u32 %v217, 7
      %v220 = vsub.s32 0, %v219
      %v221 = vsel %vm215, %v220, %v219
      %vm222 = vcmp.lt.s32.totalorder %v200, 0
      %v223 = vsub.s32 0, %v200
      %v224 = vsel %vm222, %v223, %v200
      %v225 = vshrl.u32 %v224, 3
      %v226 = vand.u32 %v224, 7
      %v227 = vsub.s32 0, %v226
      %v228 = vsel %vm222, %v227, %v226
      %vm229 = vcmp.lt.s32.totalorder %v201, 0
      %v230 = vsub.s32 0, %v201
      %v231 = vsel %vm229, %v230, %v201
      %v232 = vshrl.u32 %v231, 3
      %v233 = vand.u32 %v231, 7
      %v234 = vsub.s32 0, %v233
      %v235 = vsel %vm229, %v234, %v233
      %vm236 = vcmp.lt.s32.totalorder %v202, 0
      %v237 = vsub.s32 0, %v202
      %v238 = vsel %vm236, %v237, %v202
      %v239 = vshrl.u32 %v238, 3
      %v240 = vand.u32 %v238, 7
      %v241 = vsub.s32 0, %v240
      %v242 = vsel %vm236, %v241, %v240
      %vm243 = vcmp.lt.s32.totalorder %v203, 0
      %v244 = vsub.s32 0, %v203
      %v245 = vsel %vm243, %v244, %v203
      %v246 = vshrl.u32 %v245, 3
      %v247 = vand.u32 %v245, 7
      %v248 = vsub.s32 0, %v247
      %v249 = vsel %vm243, %v248, %v247
      %vm250 = vcmp.lt.s32.totalorder %v204, 0
      %v251 = vsub.s32 0, %v204
      %v252 = vsel %vm250, %v251, %v204
      %v253 = vshrl.u32 %v252, 3
      %v254 = vand.u32 %v252, 7
      %v255 = vsub.s32 0, %v254
      %v256 = vsel %vm250, %v255, %v254
      %vm257 = vcmp.lt.s32.totalorder %v205, 0
      %v258 = vsub.s32 0, %v205
      %v259 = vsel %vm257, %v258, %v205
      %v260 = vshrl.u32 %v259, 3
      %v261 = vand.u32 %v259, 7
      %v262 = vsub.s32 0, %v261
      %v263 = vsel %vm257, %v262, %v261
      %vm264 = vcmp.lt.s32.totalorder %v206, 0
      %v265 = vsub.s32 0, %v206
      %v266 = vsel %vm264, %v265, %v206
      %v267 = vshrl.u32 %v266, 3
      %v268 = vand.u32 %v266, 7
      %v269 = vsub.s32 0, %v268
      %v270 = vsel %vm264, %v269, %v268
      %vm271 = vcmp.lt.s32.totalorder %v207, 0
      %v272 = vsub.s32 0, %v207
      %v273 = vsel %vm271, %v272, %v207
      %v274 = vshrl.u32 %v273, 3
      %v275 = vand.u32 %v273, 7
      %v276 = vsub.s32 0, %v275
      %v277 = vsel %vm271, %v276, %v275
      %vm278 = vcmp.lt.s32.totalorder %v208, 0
      %v279 = vsub.s32 0, %v208
      %v280 = vsel %vm278, %v279, %v208
      %v281 = vshrl.u32 %v280, 3
      %v282 = vand.u32 %v280, 7
      %v283 = vsub.s32 0, %v282
      %v284 = vsel %vm278, %v283, %v282
      %vm285 = vcmp.lt.s32.totalorder %v209, 0
      %v286 = vsub.s32 0, %v209
      %v287 = vsel %vm285, %v286, %v209
      %v288 = vshrl.u32 %v287, 3
      %v289 = vand.u32 %v287, 7
      %v290 = vsub.s32 0, %v289
      %v291 = vsel %vm285, %v290, %v289
      %vm292 = vcmp.lt.s32.totalorder %v210, 0
      %v293 = vsub.s32 0, %v210
      %v294 = vsel %vm292, %v293, %v210
      %v295 = vshrl.u32 %v294, 3
      %v296 = vand.u32 %v294, 7
      %v297 = vsub.s32 0, %v296
      %v298 = vsel %vm292, %v297, %v296
      %vm299 = vcmp.lt.s32.totalorder %v211, 0
      %v300 = vsub.s32 0, %v211
      %v301 = vsel %vm299, %v300, %v211
      %v302 = vshrl.u32 %v301, 3
      %v303 = vand.u32 %v301, 7
      %v304 = vsub.s32 0, %v303
      %v305 = vsel %vm299, %v304, %v303
      %vm306 = vcmp.lt.s32.totalorder %v212, 0
      %v307 = vsub.s32 0, %v212
      %v308 = vsel %vm306, %v307, %v212
      %v309 = vshrl.u32 %v308, 3
      %v310 = vand.u32 %v308, 7
      %v311 = vsub.s32 0, %v310
      %v312 = vsel %vm306, %v311, %v310
      %vm313 = vcmp.lt.s32.totalorder %v213, 0
      %v314 = vsub.s32 0, %v213
      %v315 = vsel %vm313, %v314, %v213
      %v316 = vshrl.u32 %v315, 3
      %v317 = vand.u32 %v315, 7
      %v318 = vsub.s32 0, %v317
      %v319 = vsel %vm313, %v318, %v317
      %vm320 = vcmp.lt.s32.totalorder %v214, 0
      %v321 = vsub.s32 0, %v214
      %v322 = vsel %vm320, %v321, %v214
      %v323 = vshrl.u32 %v322, 3
      %v324 = vand.u32 %v322, 7
      %v325 = vsub.s32 0, %v324
      %v326 = vsel %vm320, %v325, %v324
      %vm327 = vcmp.ne.s32.totalorder %v221, 0
      %vm328 = vcmp.ne.s32.totalorder %v228, 0
      %vm329 = vcmp.ne.s32.totalorder %v235, 0
      %vm330 = vcmp.ne.s32.totalorder %v242, 0
      %vm331 = vcmp.ne.s32.totalorder %v249, 0
      %vm332 = vcmp.ne.s32.totalorder %v256, 0
      %vm333 = vcmp.ne.s32.totalorder %v263, 0
      %vm334 = vcmp.ne.s32.totalorder %v270, 0
      %vm335 = vcmp.ne.s32.totalorder %v277, 0
      %vm336 = vcmp.ne.s32.totalorder %v284, 0
      %vm337 = vcmp.ne.s32.totalorder %v291, 0
      %vm338 = vcmp.ne.s32.totalorder %v298, 0
      %vm339 = vcmp.ne.s32.totalorder %v305, 0
      %vm340 = vcmp.ne.s32.totalorder %v312, 0
      %vm341 = vcmp.ne.s32.totalorder %v319, 0
      %vm342 = vcmp.ne.s32.totalorder %v326, 0
      %vm343 = vcmp.lt.s32.totalorder %v221, 0
      %vm344 = vcmp.lt.s32.totalorder %v228, 0
      %vm345 = vcmp.lt.s32.totalorder %v235, 0
      %vm346 = vcmp.lt.s32.totalorder %v242, 0
      %vm347 = vcmp.lt.s32.totalorder %v249, 0
      %vm348 = vcmp.lt.s32.totalorder %v256, 0
      %vm349 = vcmp.lt.s32.totalorder %v263, 0
      %vm350 = vcmp.lt.s32.totalorder %v270, 0
      %vm351 = vcmp.lt.s32.totalorder %v277, 0
      %vm352 = vcmp.lt.s32.totalorder %v284, 0
      %vm353 = vcmp.lt.s32.totalorder %v291, 0
      %vm354 = vcmp.lt.s32.totalorder %v298, 0
      %vm355 = vcmp.lt.s32.totalorder %v305, 0
      %vm356 = vcmp.lt.s32.totalorder %v312, 0
      %vm357 = vcmp.lt.s32.totalorder %v319, 0
      %vm358 = vcmp.lt.s32.totalorder %v326, 0
      %vm359 = vmand %vm343, %vm327
      %vm360 = vmand %vm344, %vm328
      %vm361 = vmand %vm345, %vm329
      %vm362 = vmand %vm346, %vm330
      %vm363 = vmand %vm347, %vm331
      %vm364 = vmand %vm348, %vm332
      %vm365 = vmand %vm349, %vm333
      %vm366 = vmand %vm350, %vm334
      %vm367 = vmand %vm351, %vm335
      %vm368 = vmand %vm352, %vm336
      %vm369 = vmand %vm353, %vm337
      %vm370 = vmand %vm354, %vm338
      %vm371 = vmand %vm355, %vm339
      %vm372 = vmand %vm356, %vm340
      %vm373 = vmand %vm357, %vm341
      %vm374 = vmand %vm358, %vm342
      %v375 = vadd.s32 %v221, 8
      %v376 = vadd.s32 %v228, 8
      %v377 = vadd.s32 %v235, 8
      %v378 = vadd.s32 %v242, 8
      %v379 = vadd.s32 %v249, 8
      %v380 = vadd.s32 %v256, 8
      %v381 = vadd.s32 %v263, 8
      %v382 = vadd.s32 %v270, 8
      %v383 = vadd.s32 %v277, 8
      %v384 = vadd.s32 %v284, 8
      %v385 = vadd.s32 %v291, 8
      %v386 = vadd.s32 %v298, 8
      %v387 = vadd.s32 %v305, 8
      %v388 = vadd.s32 %v312, 8
      %v389 = vadd.s32 %v319, 8
      %v390 = vadd.s32 %v326, 8
      %v391 = vsel %vm359, %v375, %v221
      %v392 = vsel %vm360, %v376, %v228
      %v393 = vsel %vm361, %v377, %v235
      %v394 = vsel %vm362, %v378, %v242
      %v395 = vsel %vm363, %v379, %v249
      %v396 = vsel %vm364, %v380, %v256
      %v397 = vsel %vm365, %v381, %v263
      %v398 = vsel %vm366, %v382, %v270
      %v399 = vsel %vm367, %v383, %v277
      %v400 = vsel %vm368, %v384, %v284
      %v401 = vsel %vm369, %v385, %v291
      %v402 = vsel %vm370, %v386, %v298
      %v403 = vsel %vm371, %v387, %v305
      %v404 = vsel %vm372, %v388, %v312
      %v405 = vsel %vm373, %v389, %v319
      %v406 = vsel %vm374, %v390, %v326
      %v407 = vlaneseq
      %v408 = vand.u32 %v407, 127
      %vm409 = vcmp.eq.s32.totalorder %v391, %v408
      %vm410 = vcmp.eq.s32.totalorder %v392, %v408
      %vm411 = vcmp.eq.s32.totalorder %v393, %v408
      %vm412 = vcmp.eq.s32.totalorder %v394, %v408
      %vm413 = vcmp.eq.s32.totalorder %v395, %v408
      %vm414 = vcmp.eq.s32.totalorder %v396, %v408
      %vm415 = vcmp.eq.s32.totalorder %v397, %v408
      %vm416 = vcmp.eq.s32.totalorder %v398, %v408
      %vm417 = vcmp.eq.s32.totalorder %v399, %v408
      %vm418 = vcmp.eq.s32.totalorder %v400, %v408
      %vm419 = vcmp.eq.s32.totalorder %v401, %v408
      %vm420 = vcmp.eq.s32.totalorder %v402, %v408
      %vm421 = vcmp.eq.s32.totalorder %v403, %v408
      %vm422 = vcmp.eq.s32.totalorder %v404, %v408
      %vm423 = vcmp.eq.s32.totalorder %v405, %v408
      %vm424 = vcmp.eq.s32.totalorder %v406, %v408
      %v425 = vsel %vm409, 1, 0
      %v426 = vsel %vm410, 1, 0
      %v427 = vsel %vm411, 1, 0
      %v428 = vsel %vm412, 1, 0
      %v429 = vsel %vm413, 1, 0
      %v430 = vsel %vm414, 1, 0
      %v431 = vsel %vm415, 1, 0
      %v432 = vsel %vm416, 1, 0
      %v433 = vsel %vm417, 1, 0
      %v434 = vsel %vm418, 1, 0
      %v435 = vsel %vm419, 1, 0
      %v436 = vsel %vm420, 1, 0
      %v437 = vsel %vm421, 1, 0
      %v438 = vsel %vm422, 1, 0
      %v439 = vsel %vm423, 1, 0
      %v440 = vsel %vm424, 1, 0
      %v441 = vcvt.s32.f32 %v425
      %v442 = vcvt.s32.f32 %v426
      %v443 = vcvt.s32.f32 %v427
      %v444 = vcvt.s32.f32 %v428
      %v445 = vcvt.s32.f32 %v429
      %v446 = vcvt.s32.f32 %v430
      %v447 = vcvt.s32.f32 %v431
      %v448 = vcvt.s32.f32 %v432
      %v449 = vcvt.s32.f32 %v433
      %v450 = vcvt.s32.f32 %v434
      %v451 = vcvt.s32.f32 %v435
      %v452 = vcvt.s32.f32 %v436
      %v453 = vcvt.s32.f32 %v437
      %v454 = vcvt.s32.f32 %v438
      %v455 = vcvt.s32.f32 %v439
      %v456 = vcvt.s32.f32 %v440
      %vm457 = vcmp.lt.s32.totalorder %v408, 0
      %v458 = vsub.s32 0, %v408
      %v459 = vsel %vm457, %v458, %v408
      %v460 = vshrl.u32 %v459, 3
      %v461 = vand.u32 %v459, 7
      %v462 = vsub.s32 0, %v461
      %v463 = vsel %vm457, %v462, %v461
      %vm464 = vcmp.ne.s32.totalorder %v463, 0
      %vm465 = vcmp.lt.s32.totalorder %v463, 0
      %vm466 = vmand %vm465, %vm464
      %v467 = vadd.s32 %v463, 8
      %v468 = vsel %vm466, %v467, %v463
      %vm469 = vcmp.eq.s32.totalorder %v468, %v199
      %v470 = vsel %vm469, 1, 0
      %v471 = vcvt.s32.f32 %v470
      %vm472 = vcmask 588800
      %473 = vst.msk [vmem:[#allocation2] sm:$0xff] %vm472, 0.0
      %474 = vst.msk [vmem:[#allocation2 + $0x8] sm:$0xff] %vm472, 0.0
      %vm475 = vcmask 582656
      %476 = vst.msk [vmem:[#allocation2 + $0x10] sm:$0x3] %vm475, 0.0
      %v477 = vld [vmem:[%s192] sm:$0xff]
      %v478 = vld [vmem:[%s192 + $0x8] sm:$0xff]
      %481 = vrot.lane.b32.xlu0 %v477, 4
      %v482 = vpop.permute.xlu0 %481
      %483 = vrot.lane.b32.xlu0 %v478, 4
      %v484 = vpop.permute.xlu0 %483
      %vm487 = vcmask 556064
      %488 = vst.msk [vmem:[#allocation2 + $0x1] sm:$0xff] %vm487, %v482
      %489 = vst.msk [vmem:[#allocation2 + $0x9] sm:$0xff] %vm487, %v484
      %v490 = vld [vmem:[%s3] sm:$0x1]
      %v491 = vld [vmem:[%s3 + $0x1] sm:$0x1]
      %v492 = vld [vmem:[%s3 + $0x2] sm:$0x1]
      %v493 = vld [vmem:[#allocation2] sm:$0xff]
      %v494 = vld [vmem:[#allocation2 + $0x8] sm:$0xff]
      %v495 = vld [vmem:[%s1] sm:$0xff]
      %v496 = vld [vmem:[%s1 + $0x8] sm:$0xff]
      %v497 = vld [vmem:[%s1 + $0x10] sm:$0xff]
      %v498 = vld [vmem:[%s1 + $0x18] sm:$0xff]
      %v499 = vld [vmem:[%s1 + $0x20] sm:$0xff]
      %v500 = vld [vmem:[%s1 + $0x28] sm:$0xff]
      %v501 = vld [vmem:[%s1 + $0x30] sm:$0xff]
      %v502 = vld [vmem:[%s1 + $0x38] sm:$0xff]
      %v503 = vld [vmem:[%s1 + $0x40] sm:$0xff]
      %v504 = vld [vmem:[#allocation2 + $0x1] sm:$0xff]
      %v505 = vld [vmem:[#allocation2 + $0x9] sm:$0xff]
      %s506 = scalar_lea.vmem %s1, 72
      %v507 = vld [vmem:[%s506] sm:$0xff]
      %v508 = vld [vmem:[%s506 + $0x8] sm:$0xff]
      %v509 = vld [vmem:[%s506 + $0x10] sm:$0xff]
      %v510 = vld [vmem:[%s506 + $0x18] sm:$0xff]
      %v511 = vld [vmem:[%s506 + $0x20] sm:$0xff]
      %v512 = vld [vmem:[%s506 + $0x28] sm:$0xff]
      %v513 = vld [vmem:[%s506 + $0x30] sm:$0xff]
      %v514 = vld [vmem:[%s506 + $0x38] sm:$0xff]
      %v515 = vld [vmem:[%s506 + $0x40] sm:$0xff]
      %v517 = vsel %vm472, %v504, 0
      %v520 = vsel %vm472, %v505, 0
      %522 = vmatprep.subr.mxu0 0.0
      %523 = vmatpush1.msra.mxu0 0.0
      %524 = vmatprep.subr.mxu0 0.0
      %525 = vmatpush1.msra.mxu0 0.0
      %526 = vmatprep.subr.mxu0 0.0
      %527 = vmatpush1.msra.mxu0 0.0
      %528 = vmatprep.subr.mxu0 0.0
      %529 = vmatpush1.msra.mxu0 0.0
      %530 = vmatprep.subr.mxu0 0.0
      %531 = vmatpush1.msra.mxu0 0.0
      %532 = vmatprep.subr.mxu0 0.0
      %533 = vmatpush1.msra.mxu0 0.0
      %534 = vmatprep.subr.mxu0 0.0
      %535 = vmatpush1.msra.mxu0 0.0
      %536 = vmatprep.subr.mxu0 0.0
      %537 = vmatpush1.msra.mxu0 %v515
      %538 = vmatprep.subr.mxu0 0.0
      %539 = vmatpush1.msra.mxu0 %v514
      %540 = vmatprep.subr.mxu0 0.0
      %541 = vmatpush1.msra.mxu0 %v513
      %542 = vmatprep.subr.mxu0 0.0
      %543 = vmatpush1.msra.mxu0 %v512
      %544 = vmatprep.subr.mxu0 0.0
      %545 = vmatpush1.msra.mxu0 %v511
      %546 = vmatprep.subr.mxu0 0.0
      %547 = vmatpush1.msra.mxu0 %v510
      %548 = vmatprep.subr.mxu0 0.0
      %549 = vmatpush1.msra.mxu0 %v509
      %550 = vmatprep.subr.mxu0 0.0
      %551 = vmatpush1.msra.mxu0 %v508
      %552 = vmatprep.subr.mxu0 0.0
      %553 = vmatpush1.msra.mxu0 %v507
      %554 = vmatprep.subr.mxu0 0.0
      %555 = vmatpush2.msra.mxu0 0.0
      %556 = vmatprep.subr.mxu0 0.0
      %557 = vmatpush2.msra.mxu0 0.0
      %558 = vmatprep.subr.mxu0 0.0
      %559 = vmatpush2.msra.mxu0 0.0
      %560 = vmatprep.subr.mxu0 0.0
      %561 = vmatpush2.msra.mxu0 0.0
      %562 = vmatprep.subr.mxu0 0.0
      %563 = vmatpush2.msra.mxu0 0.0
      %564 = vmatprep.subr.mxu0 0.0
      %565 = vmatpush2.msra.mxu0 0.0
      %566 = vmatprep.subr.mxu0 0.0
      %567 = vmatpush2.msra.mxu0 0.0
      %568 = vmatprep.subr.mxu0 0.0
      %569 = vmatpush2.msra.mxu0 0.0
      %570 = vmatprep.subr.mxu0 0.0
      %571 = vmatpush2.msra.mxu0 0.0
      %572 = vmatprep.subr.mxu0 0.0
      %573 = vmatpush2.msra.mxu0 0.0
      %574 = vmatprep.subr.mxu0 0.0
      %575 = vmatpush2.msra.mxu0 0.0
      %576 = vmatprep.subr.mxu0 0.0
      %577 = vmatpush2.msra.mxu0 0.0
      %578 = vmatprep.subr.mxu0 0.0
      %579 = vmatpush2.msra.mxu0 0.0
      %580 = vmatprep.subr.mxu0 0.0
      %581 = vmatpush2.msra.mxu0 0.0
      %582 = vmatprep.subr.mxu0 0.0
      %583 = vmatpush2.msra.mxu0 0.0
      %584 = vmatprep.subr.mxu0 0.0
      %585 = vmatpush2.msra.mxu0 0.0
      %586 = vmatprep.mubr.f32.mxu0 0.0
      %587 = vmatmul.mubr.f32.gmra.mxu0 %v517
      %v588 = vpop.f32.mrf.mxu0
      %v589 = vadd.f32 0.0, %v588
      %v590 = vpop.f32.mrf.mxu0
      %591 = vmatprep.mubr.f32.mxu0 0.0
      %592 = vmatmul.mubr.f32.gmra.mxu0 %v520
      %v593 = vpop.f32.mrf.mxu0
      %v594 = vadd.f32 0.0, %v593
      %v595 = vpop.f32.mrf.mxu0
      %596 = vdwg.mxu0
      %v598 = vsel %vm472, %v493, 0
      %v601 = vsel %vm472, %v494, 0
      %603 = vmatprep.subr.mxu0 0.0
      %604 = vmatpush1.msra.mxu0 0.0
      %605 = vmatprep.subr.mxu0 0.0
      %606 = vmatpush1.msra.mxu0 0.0
      %607 = vmatprep.subr.mxu0 0.0
      %608 = vmatpush1.msra.mxu0 0.0
      %609 = vmatprep.subr.mxu0 0.0
      %610 = vmatpush1.msra.mxu0 0.0
      %611 = vmatprep.subr.mxu0 0.0
      %612 = vmatpush1.msra.mxu0 0.0
      %613 = vmatprep.subr.mxu0 0.0
      %614 = vmatpush1.msra.mxu0 0.0
      %615 = vmatprep.subr.mxu0 0.0
      %616 = vmatpush1.msra.mxu0 0.0
      %617 = vmatprep.subr.mxu0 0.0
      %618 = vmatpush1.msra.mxu0 %v503
      %619 = vmatprep.subr.mxu0 0.0
      %620 = vmatpush1.msra.mxu0 %v502
      %621 = vmatprep.subr.mxu0 0.0
      %622 = vmatpush1.msra.mxu0 %v501
      %623 = vmatprep.subr.mxu0 0.0
      %624 = vmatpush1.msra.mxu0 %v500
      %625 = vmatprep.subr.mxu0 0.0
      %626 = vmatpush1.msra.mxu0 %v499
      %627 = vmatprep.subr.mxu0 0.0
      %628 = vmatpush1.msra.mxu0 %v498
      %629 = vmatprep.subr.mxu0 0.0
      %630 = vmatpush1.msra.mxu0 %v497
      %631 = vmatprep.subr.mxu0 0.0
      %632 = vmatpush1.msra.mxu0 %v496
      %633 = vmatprep.subr.mxu0 0.0
      %634 = vmatpush1.msra.mxu0 %v495
      %635 = vmatprep.subr.mxu0 0.0
      %636 = vmatpush2.msra.mxu0 0.0
      %637 = vmatprep.subr.mxu0 0.0
      %638 = vmatpush2.msra.mxu0 0.0
      %639 = vmatprep.subr.mxu0 0.0
      %640 = vmatpush2.msra.mxu0 0.0
      %641 = vmatprep.subr.mxu0 0.0
      %642 = vmatpush2.msra.mxu0 0.0
      %643 = vmatprep.subr.mxu0 0.0
      %644 = vmatpush2.msra.mxu0 0.0
      %645 = vmatprep.subr.mxu0 0.0
      %646 = vmatpush2.msra.mxu0 0.0
      %647 = vmatprep.subr.mxu0 0.0
      %648 = vmatpush2.msra.mxu0 0.0
      %649 = vmatprep.subr.mxu0 0.0
      %650 = vmatpush2.msra.mxu0 0.0
      %651 = vmatprep.subr.mxu0 0.0
      %652 = vmatpush2.msra.mxu0 0.0
      %653 = vmatprep.subr.mxu0 0.0
      %654 = vmatpush2.msra.mxu0 0.0
      %655 = vmatprep.subr.mxu0 0.0
      %656 = vmatpush2.msra.mxu0 0.0
      %657 = vmatprep.subr.mxu0 0.0
      %658 = vmatpush2.msra.mxu0 0.0
      %659 = vmatprep.subr.mxu0 0.0
      %660 = vmatpush2.msra.mxu0 0.0
      %661 = vmatprep.subr.mxu0 0.0
      %662 = vmatpush2.msra.mxu0 0.0
      %663 = vmatprep.subr.mxu0 0.0
      %664 = vmatpush2.msra.mxu0 0.0
      %665 = vmatprep.subr.mxu0 0.0
      %666 = vmatpush2.msra.mxu0 0.0
      %667 = vmatprep.mubr.f32.mxu0 0.0
      %668 = vmatmul.mubr.f32.gmra.mxu0 %v598
      %v669 = vpop.f32.mrf.mxu0
      %v670 = vadd.f32 %v589, %v669
      %v671 = vpop.f32.mrf.mxu0
      %672 = vmatprep.mubr.f32.mxu0 0.0
      %673 = vmatmul.mubr.f32.gmra.mxu0 %v601
      %v674 = vpop.f32.mrf.mxu0
      %v675 = vadd.f32 %v594, %v674
      %v676 = vpop.f32.mrf.mxu0
      %677 = vdwg.mxu0
      %v678 = vld [vmem:[#allocation2 + $0x2] sm:$0xff]
      %v679 = vld [vmem:[#allocation2 + $0xa] sm:$0xff]
      %s680 = scalar_lea.vmem %s1, 144
      %v681 = vld [vmem:[%s680] sm:$0xff]
      %v682 = vld [vmem:[%s680 + $0x8] sm:$0xff]
      %v683 = vld [vmem:[%s680 + $0x10] sm:$0xff]
      %v684 = vld [vmem:[%s680 + $0x18] sm:$0xff]
      %v685 = vld [vmem:[%s680 + $0x20] sm:$0xff]
      %v686 = vld [vmem:[%s680 + $0x28] sm:$0xff]
      %v687 = vld [vmem:[%s680 + $0x30] sm:$0xff]
      %v688 = vld [vmem:[%s680 + $0x38] sm:$0xff]
      %v689 = vld [vmem:[%s680 + $0x40] sm:$0xff]
      %v691 = vsel %vm472, %v678, 0
      %v694 = vsel %vm472, %v679, 0
      %696 = vmatprep.subr.mxu0 0.0
      %697 = vmatpush1.msra.mxu0 0.0
      %698 = vmatprep.subr.mxu0 0.0
      %699 = vmatpush1.msra.mxu0 0.0
      %700 = vmatprep.subr.mxu0 0.0
      %701 = vmatpush1.msra.mxu0 0.0
      %702 = vmatprep.subr.mxu0 0.0
      %703 = vmatpush1.msra.mxu0 0.0
      %704 = vmatprep.subr.mxu0 0.0
      %705 = vmatpush1.msra.mxu0 0.0
      %706 = vmatprep.subr.mxu0 0.0
      %707 = vmatpush1.msra.mxu0 0.0
      %708 = vmatprep.subr.mxu0 0.0
      %709 = vmatpush1.msra.mxu0 0.0
      %710 = vmatprep.subr.mxu0 0.0
      %711 = vmatpush1.msra.mxu0 %v689
      %712 = vmatprep.subr.mxu0 0.0
      %713 = vmatpush1.msra.mxu0 %v688
      %714 = vmatprep.subr.mxu0 0.0
      %715 = vmatpush1.msra.mxu0 %v687
      %716 = vmatprep.subr.mxu0 0.0
      %717 = vmatpush1.msra.mxu0 %v686
      %718 = vmatprep.subr.mxu0 0.0
      %719 = vmatpush1.msra.mxu0 %v685
      %720 = vmatprep.subr.mxu0 0.0
      %721 = vmatpush1.msra.mxu0 %v684
      %722 = vmatprep.subr.mxu0 0.0
      %723 = vmatpush1.msra.mxu0 %v683
      %724 = vmatprep.subr.mxu0 0.0
      %725 = vmatpush1.msra.mxu0 %v682
      %726 = vmatprep.subr.mxu0 0.0
      %727 = vmatpush1.msra.mxu0 %v681
      %728 = vmatprep.subr.mxu0 0.0
      %729 = vmatpush2.msra.mxu0 0.0
      %730 = vmatprep.subr.mxu0 0.0
      %731 = vmatpush2.msra.mxu0 0.0
      %732 = vmatprep.subr.mxu0 0.0
      %733 = vmatpush2.msra.mxu0 0.0
      %734 = vmatprep.subr.mxu0 0.0
      %735 = vmatpush2.msra.mxu0 0.0
      %736 = vmatprep.subr.mxu0 0.0
      %737 = vmatpush2.msra.mxu0 0.0
      %738 = vmatprep.subr.mxu0 0.0
      %739 = vmatpush2.msra.mxu0 0.0
      %740 = vmatprep.subr.mxu0 0.0
      %741 = vmatpush2.msra.mxu0 0.0
      %742 = vmatprep.subr.mxu0 0.0
      %743 = vmatpush2.msra.mxu0 0.0
      %744 = vmatprep.subr.mxu0 0.0
      %745 = vmatpush2.msra.mxu0 0.0
      %746 = vmatprep.subr.mxu0 0.0
      %747 = vmatpush2.msra.mxu0 0.0
      %748 = vmatprep.subr.mxu0 0.0
      %749 = vmatpush2.msra.mxu0 0.0
      %750 = vmatprep.subr.mxu0 0.0
      %751 = vmatpush2.msra.mxu0 0.0
      %752 = vmatprep.subr.mxu0 0.0
      %753 = vmatpush2.msra.mxu0 0.0
      %754 = vmatprep.subr.mxu0 0.0
      %755 = vmatpush2.msra.mxu0 0.0
      %756 = vmatprep.subr.mxu0 0.0
      %757 = vmatpush2.msra.mxu0 0.0
      %758 = vmatprep.subr.mxu0 0.0
      %759 = vmatpush2.msra.mxu0 0.0
      %760 = vmatprep.mubr.f32.mxu0 0.0
      %761 = vmatmul.mubr.f32.gmra.mxu0 %v691
      %v762 = vpop.f32.mrf.mxu0
      %v763 = vadd.f32 0.0, %v762
      %v764 = vpop.f32.mrf.mxu0
      %765 = vmatprep.mubr.f32.mxu0 0.0
      %766 = vmatmul.mubr.f32.gmra.mxu0 %v694
      %v767 = vpop.f32.mrf.mxu0
      %v768 = vadd.f32 0.0, %v767
      %v769 = vpop.f32.mrf.mxu0
      %770 = vdwg.mxu0
      %v771 = vadd.f32 %v670, %v763
      %v772 = vadd.f32 %v675, %v768
      %vm773 = vcmask 64512
      %v775 = vsel %vm773, %v490, 0
      %777 = vmatprep.subr.mxu0 0.0
      %778 = vmatpush1.msra.mxu0 0.0
      %779 = vmatprep.subr.mxu0 0.0
      %780 = vmatpush1.msra.mxu0 0.0
      %781 = vmatprep.subr.mxu0 0.0
      %782 = vmatpush1.msra.mxu0 0.0
      %783 = vmatprep.subr.mxu0 0.0
      %784 = vmatpush1.msra.mxu0 0.0
      %785 = vmatprep.subr.mxu0 0.0
      %786 = vmatpush1.msra.mxu0 0.0
      %787 = vmatprep.subr.mxu0 0.0
      %788 = vmatpush1.msra.mxu0 0.0
      %789 = vmatprep.subr.mxu0 0.0
      %790 = vmatpush1.msra.mxu0 0.0
      %791 = vmatprep.subr.mxu0 0.0
      %792 = vmatpush1.msra.mxu0 0.0
      %793 = vmatprep.subr.mxu0 0.0
      %794 = vmatpush1.msra.mxu0 0.0
      %795 = vmatprep.subr.mxu0 0.0
      %796 = vmatpush1.msra.mxu0 0.0
      %797 = vmatprep.subr.mxu0 0.0
      %798 = vmatpush1.msra.mxu0 0.0
      %799 = vmatprep.subr.mxu0 0.0
      %800 = vmatpush1.msra.mxu0 0.0
      %801 = vmatprep.subr.mxu0 0.0
      %802 = vmatpush1.msra.mxu0 0.0
      %803 = vmatprep.subr.mxu0 0.0
      %804 = vmatpush1.msra.mxu0 0.0
      %805 = vmatprep.subr.mxu0 0.0
      %806 = vmatpush1.msra.mxu0 0.0
      %807 = vmatprep.subr.mxu0 0.0
      %808 = vmatpush1.msra.mxu0 %v471
      %809 = vmatprep.subr.mxu0 0.0
      %810 = vmatpush2.msra.mxu0 0.0
      %811 = vmatprep.subr.mxu0 0.0
      %812 = vmatpush2.msra.mxu0 0.0
      %813 = vmatprep.subr.mxu0 0.0
      %814 = vmatpush2.msra.mxu0 0.0
      %815 = vmatprep.subr.mxu0 0.0
      %816 = vmatpush2.msra.mxu0 0.0
      %817 = vmatprep.subr.mxu0 0.0
      %818 = vmatpush2.msra.mxu0 0.0
      %819 = vmatprep.subr.mxu0 0.0
      %820 = vmatpush2.msra.mxu0 0.0
      %821 = vmatprep.subr.mxu0 0.0
      %822 = vmatpush2.msra.mxu0 0.0
      %823 = vmatprep.subr.mxu0 0.0
      %824 = vmatpush2.msra.mxu0 0.0
      %825 = vmatprep.subr.mxu0 0.0
      %826 = vmatpush2.msra.mxu0 0.0
      %827 = vmatprep.subr.mxu0 0.0
      %828 = vmatpush2.msra.mxu0 0.0
      %829 = vmatprep.subr.mxu0 0.0
      %830 = vmatpush2.msra.mxu0 0.0
      %831 = vmatprep.subr.mxu0 0.0
      %832 = vmatpush2.msra.mxu0 0.0
      %833 = vmatprep.subr.mxu0 0.0
      %834 = vmatpush2.msra.mxu0 0.0
      %835 = vmatprep.subr.mxu0 0.0
      %836 = vmatpush2.msra.mxu0 0.0
      %837 = vmatprep.subr.mxu0 0.0
      %838 = vmatpush2.msra.mxu0 0.0
      %839 = vmatprep.subr.mxu0 0.0
      %840 = vmatpush2.msra.mxu0 0.0
      %841 = vmatprep.mubr.f32.mxu0 0.0
      %842 = vmatmul.mubr.f32.gmra.mxu0 %v775
      %v843 = vpop.f32.mrf.mxu0
      %v844 = vadd.f32 0.0, %v843
      %v845 = vpop.f32.mrf.mxu0
      %846 = vdwg.mxu0
      %v847 = vlaneseq
      %v848 = vshrl.u32 %v847, 7
      %v849 = vsub.s32 0, %v848
      %v850 = vrot.slane %v844, %v849
      %v851 = vadd.f32 %v771, %v850
      %v852 = vadd.f32 %v772, %v850
      %v853 = vadd.f32 %v851, %v852
      %v854 = vrot.slane %v853, 4
      %v855 = vadd.f32 %v853, %v854
      %v856 = vrot.slane %v855, 2
      %v857 = vadd.f32 %v855, %v856
      %v858 = vrot.slane %v857, 1
      %v859 = vadd.f32 %v857, %v858
      %v860 = vmul.f32 %v851, %v851
      %v861 = vmul.f32 %v852, %v852
      %v862 = vadd.f32 %v860, %v861
      %v863 = vrot.slane %v862, 4
      %v864 = vadd.f32 %v862, %v863
      %v865 = vrot.slane %v864, 2
      %v866 = vadd.f32 %v864, %v865
      %v867 = vrot.slane %v866, 1
      %v868 = vadd.f32 %v866, %v867
      %869 = vmatprep.subr.mxu0 0.0
      %870 = vmatpush1.msra.mxu0 %v456
      %871 = vmatprep.subr.mxu0 0.0
      %872 = vmatpush1.msra.mxu0 %v455
      %873 = vmatprep.subr.mxu0 0.0
      %874 = vmatpush1.msra.mxu0 %v454
      %875 = vmatprep.subr.mxu0 0.0
      %876 = vmatpush1.msra.mxu0 %v453
      %877 = vmatprep.subr.mxu0 0.0
      %878 = vmatpush1.msra.mxu0 %v452
      %879 = vmatprep.subr.mxu0 0.0
      %880 = vmatpush1.msra.mxu0 %v451
      %881 = vmatprep.subr.mxu0 0.0
      %882 = vmatpush1.msra.mxu0 %v450
      %883 = vmatprep.subr.mxu0 0.0
      %884 = vmatpush1.msra.mxu0 %v449
      %885 = vmatprep.subr.mxu0 0.0
      %886 = vmatpush1.msra.mxu0 %v448
      %887 = vmatprep.subr.mxu0 0.0
      %888 = vmatpush1.msra.mxu0 %v447
      %889 = vmatprep.subr.mxu0 0.0
      %890 = vmatpush1.msra.mxu0 %v446
      %891 = vmatprep.subr.mxu0 0.0
      %892 = vmatpush1.msra.mxu0 %v445
      %893 = vmatprep.subr.mxu0 0.0
      %894 = vmatpush1.msra.mxu0 %v444
      %895 = vmatprep.subr.mxu0 0.0
      %896 = vmatpush1.msra.mxu0 %v443
      %897 = vmatprep.subr.mxu0 0.0
      %898 = vmatpush1.msra.mxu0 %v442
      %899 = vmatprep.subr.mxu0 0.0
      %900 = vmatpush1.msra.mxu0 %v441
      %901 = vmatprep.subr.mxu0 0.0
      %902 = vmatpush2.msra.mxu0 0.0
      %903 = vmatprep.subr.mxu0 0.0
      %904 = vmatpush2.msra.mxu0 0.0
      %905 = vmatprep.subr.mxu0 0.0
      %906 = vmatpush2.msra.mxu0 0.0
      %907 = vmatprep.subr.mxu0 0.0
      %908 = vmatpush2.msra.mxu0 0.0
      %909 = vmatprep.subr.mxu0 0.0
      %910 = vmatpush2.msra.mxu0 0.0
      %911 = vmatprep.subr.mxu0 0.0
      %912 = vmatpush2.msra.mxu0 0.0
      %913 = vmatprep.subr.mxu0 0.0
      %914 = vmatpush2.msra.mxu0 0.0
      %915 = vmatprep.subr.mxu0 0.0
      %916 = vmatpush2.msra.mxu0 0.0
      %917 = vmatprep.subr.mxu0 0.0
      %918 = vmatpush2.msra.mxu0 0.0
      %919 = vmatprep.subr.mxu0 0.0
      %920 = vmatpush2.msra.mxu0 0.0
      %921 = vmatprep.subr.mxu0 0.0
      %922 = vmatpush2.msra.mxu0 0.0
      %923 = vmatprep.subr.mxu0 0.0
      %924 = vmatpush2.msra.mxu0 0.0
      %925 = vmatprep.subr.mxu0 0.0
      %926 = vmatpush2.msra.mxu0 0.0
      %927 = vmatprep.subr.mxu0 0.0
      %928 = vmatpush2.msra.mxu0 0.0
      %929 = vmatprep.subr.mxu0 0.0
      %930 = vmatpush2.msra.mxu0 0.0
      %931 = vmatprep.subr.mxu0 0.0
      %932 = vmatpush2.msra.mxu0 0.0
      %933 = vmatprep.mubr.f32.mxu0 0.0
      %934 = vmatmul.mubr.f32.gmra.mxu0 %v859
      %v935 = vpop.f32.mrf.mxu0
      %v936 = vadd.f32 0.0, %v935
      %v937 = vpop.f32.mrf.mxu0
      %938 = vdwg.mxu0
      %v939 = vmul.f32 %v936, 0.00390625
      %940 = vmatprep.subr.mxu0 0.0
      %941 = vmatpush1.msra.mxu0 %v456
      %942 = vmatprep.subr.mxu0 0.0
      %943 = vmatpush1.msra.mxu0 %v455
      %944 = vmatprep.subr.mxu0 0.0
      %945 = vmatpush1.msra.mxu0 %v454
      %946 = vmatprep.subr.mxu0 0.0
      %947 = vmatpush1.msra.mxu0 %v453
      %948 = vmatprep.subr.mxu0 0.0
      %949 = vmatpush1.msra.mxu0 %v452
      %950 = vmatprep.subr.mxu0 0.0
      %951 = vmatpush1.msra.mxu0 %v451
      %952 = vmatprep.subr.mxu0 0.0
      %953 = vmatpush1.msra.mxu0 %v450
      %954 = vmatprep.subr.mxu0 0.0
      %955 = vmatpush1.msra.mxu0 %v449
      %956 = vmatprep.subr.mxu0 0.0
      %957 = vmatpush1.msra.mxu0 %v448
      %958 = vmatprep.subr.mxu0 0.0
      %959 = vmatpush1.msra.mxu0 %v447
      %960 = vmatprep.subr.mxu0 0.0
      %961 = vmatpush1.msra.mxu0 %v446
      %962 = vmatprep.subr.mxu0 0.0
      %963 = vmatpush1.msra.mxu0 %v445
      %964 = vmatprep.subr.mxu0 0.0
      %965 = vmatpush1.msra.mxu0 %v444
      %966 = vmatprep.subr.mxu0 0.0
      %967 = vmatpush1.msra.mxu0 %v443
      %968 = vmatprep.subr.mxu0 0.0
      %969 = vmatpush1.msra.mxu0 %v442
      %970 = vmatprep.subr.mxu0 0.0
      %971 = vmatpush1.msra.mxu0 %v441
      %972 = vmatprep.subr.mxu0 0.0
      %973 = vmatpush2.msra.mxu0 0.0
      %974 = vmatprep.subr.mxu0 0.0
      %975 = vmatpush2.msra.mxu0 0.0
      %976 = vmatprep.subr.mxu0 0.0
      %977 = vmatpush2.msra.mxu0 0.0
      %978 = vmatprep.subr.mxu0 0.0
      %979 = vmatpush2.msra.mxu0 0.0
      %980 = vmatprep.subr.mxu0 0.0
      %981 = vmatpush2.msra.mxu0 0.0
      %982 = vmatprep.subr.mxu0 0.0
      %983 = vmatpush2.msra.mxu0 0.0
      %984 = vmatprep.subr.mxu0 0.0
      %985 = vmatpush2.msra.mxu0 0.0
      %986 = vmatprep.subr.mxu0 0.0
      %987 = vmatpush2.msra.mxu0 0.0
      %988 = vmatprep.subr.mxu0 0.0
      %989 = vmatpush2.msra.mxu0 0.0
      %990 = vmatprep.subr.mxu0 0.0
      %991 = vmatpush2.msra.mxu0 0.0
      %992 = vmatprep.subr.mxu0 0.0
      %993 = vmatpush2.msra.mxu0 0.0
      %994 = vmatprep.subr.mxu0 0.0
      %995 = vmatpush2.msra.mxu0 0.0
      %996 = vmatprep.subr.mxu0 0.0
      %997 = vmatpush2.msra.mxu0 0.0
      %998 = vmatprep.subr.mxu0 0.0
      %999 = vmatpush2.msra.mxu0 0.0
      %1000 = vmatprep.subr.mxu0 0.0
      %1001 = vmatpush2.msra.mxu0 0.0
      %1002 = vmatprep.subr.mxu0 0.0
      %1003 = vmatpush2.msra.mxu0 0.0
      %1004 = vmatprep.mubr.f32.mxu0 0.0
      %1005 = vmatmul.mubr.f32.gmra.mxu0 %v868
      %v1006 = vpop.f32.mrf.mxu0
      %v1007 = vadd.f32 0.0, %v1006
      %v1008 = vpop.f32.mrf.mxu0
      %1009 = vdwg.mxu0
      %v1010 = vmul.f32 %v1007, 0.00390625
      %v1011 = vmul.f32 %v939, %v939
      %v1012 = vsub.f32 %v1010, %v1011
      %v1013 = vmax.f32 %v1012, 0.0
      %v1014 = vadd.f32 %v1013, 1e-05
      %v1015 = vrsqrt.pop %v1014
      %v1016 = vmul.f32 %v491, %v1015
      %v1017 = vmul.f32 %v939, %v1016
      %v1018 = vsub.f32 %v492, %v1017
      %v1020 = vsel %vm773, %v1016, 0
      %1022 = vmatprep.subr.mxu0 0.0
      %1023 = vmatpush1.msra.mxu0 0.0
      %1024 = vmatprep.subr.mxu0 0.0
      %1025 = vmatpush1.msra.mxu0 0.0
      %1026 = vmatprep.subr.mxu0 0.0
      %1027 = vmatpush1.msra.mxu0 0.0
      %1028 = vmatprep.subr.mxu0 0.0
      %1029 = vmatpush1.msra.mxu0 0.0
      %1030 = vmatprep.subr.mxu0 0.0
      %1031 = vmatpush1.msra.mxu0 0.0
      %1032 = vmatprep.subr.mxu0 0.0
      %1033 = vmatpush1.msra.mxu0 0.0
      %1034 = vmatprep.subr.mxu0 0.0
      %1035 = vmatpush1.msra.mxu0 0.0
      %1036 = vmatprep.subr.mxu0 0.0
      %1037 = vmatpush1.msra.mxu0 0.0
      %1038 = vmatprep.subr.mxu0 0.0
      %1039 = vmatpush1.msra.mxu0 0.0
      %1040 = vmatprep.subr.mxu0 0.0
      %1041 = vmatpush1.msra.mxu0 0.0
      %1042 = vmatprep.subr.mxu0 0.0
      %1043 = vmatpush1.msra.mxu0 0.0
      %1044 = vmatprep.subr.mxu0 0.0
      %1045 = vmatpush1.msra.mxu0 0.0
      %1046 = vmatprep.subr.mxu0 0.0
      %1047 = vmatpush1.msra.mxu0 0.0
      %1048 = vmatprep.subr.mxu0 0.0
      %1049 = vmatpush1.msra.mxu0 0.0
      %1050 = vmatprep.subr.mxu0 0.0
      %1051 = vmatpush1.msra.mxu0 0.0
      %1052 = vmatprep.subr.mxu0 0.0
      %1053 = vmatpush1.msra.mxu0 %v471
      %1054 = vmatprep.subr.mxu0 0.0
      %1055 = vmatpush2.msra.mxu0 0.0
      %1056 = vmatprep.subr.mxu0 0.0
      %1057 = vmatpush2.msra.mxu0 0.0
      %1058 = vmatprep.subr.mxu0 0.0
      %1059 = vmatpush2.msra.mxu0 0.0
      %1060 = vmatprep.subr.mxu0 0.0
      %1061 = vmatpush2.msra.mxu0 0.0
      %1062 = vmatprep.subr.mxu0 0.0
      %1063 = vmatpush2.msra.mxu0 0.0
      %1064 = vmatprep.subr.mxu0 0.0
      %1065 = vmatpush2.msra.mxu0 0.0
      %1066 = vmatprep.subr.mxu0 0.0
      %1067 = vmatpush2.msra.mxu0 0.0
      %1068 = vmatprep.subr.mxu0 0.0
      %1069 = vmatpush2.msra.mxu0 0.0
      %1070 = vmatprep.subr.mxu0 0.0
      %1071 = vmatpush2.msra.mxu0 0.0
      %1072 = vmatprep.subr.mxu0 0.0
      %1073 = vmatpush2.msra.mxu0 0.0
      %1074 = vmatprep.subr.mxu0 0.0
      %1075 = vmatpush2.msra.mxu0 0.0
      %1076 = vmatprep.subr.mxu0 0.0
      %1077 = vmatpush2.msra.mxu0 0.0
      %1078 = vmatprep.subr.mxu0 0.0
      %1079 = vmatpush2.msra.mxu0 0.0
      %1080 = vmatprep.subr.mxu0 0.0
      %1081 = vmatpush2.msra.mxu0 0.0
      %1082 = vmatprep.subr.mxu0 0.0
      %1083 = vmatpush2.msra.mxu0 0.0
      %1084 = vmatprep.subr.mxu0 0.0
      %1085 = vmatpush2.msra.mxu0 0.0
      %1086 = vmatprep.mubr.f32.mxu0 0.0
      %1087 = vmatmul.mubr.f32.gmra.mxu0 %v1020
      %v1088 = vpop.f32.mrf.mxu0
      %v1089 = vadd.f32 0.0, %v1088
      %v1090 = vpop.f32.mrf.mxu0
      %1091 = vdwg.mxu0
      %v1093 = vsel %vm773, %v1018, 0
      %1095 = vmatprep.subr.mxu0 0.0
      %1096 = vmatpush1.msra.mxu0 0.0
      %1097 = vmatprep.subr.mxu0 0.0
      %1098 = vmatpush1.msra.mxu0 0.0
      %1099 = vmatprep.subr.mxu0 0.0
      %1100 = vmatpush1.msra.mxu0 0.0
      %1101 = vmatprep.subr.mxu0 0.0
      %1102 = vmatpush1.msra.mxu0 0.0
      %1103 = vmatprep.subr.mxu0 0.0
      %1104 = vmatpush1.msra.mxu0 0.0
      %1105 = vmatprep.subr.mxu0 0.0
      %1106 = vmatpush1.msra.mxu0 0.0
      %1107 = vmatprep.subr.mxu0 0.0
      %1108 = vmatpush1.msra.mxu0 0.0
      %1109 = vmatprep.subr.mxu0 0.0
      %1110 = vmatpush1.msra.mxu0 0.0
      %1111 = vmatprep.subr.mxu0 0.0
      %1112 = vmatpush1.msra.mxu0 0.0
      %1113 = vmatprep.subr.mxu0 0.0
      %1114 = vmatpush1.msra.mxu0 0.0
      %1115 = vmatprep.subr.mxu0 0.0
      %1116 = vmatpush1.msra.mxu0 0.0
      %1117 = vmatprep.subr.mxu0 0.0
      %1118 = vmatpush1.msra.mxu0 0.0
      %1119 = vmatprep.subr.mxu0 0.0
      %1120 = vmatpush1.msra.mxu0 0.0
      %1121 = vmatprep.subr.mxu0 0.0
      %1122 = vmatpush1.msra.mxu0 0.0
      %1123 = vmatprep.subr.mxu0 0.0
      %1124 = vmatpush1.msra.mxu0 0.0
      %1125 = vmatprep.subr.mxu0 0.0
      %1126 = vmatpush1.msra.mxu0 %v471
      %1127 = vmatprep.subr.mxu0 0.0
      %1128 = vmatpush2.msra.mxu0 0.0
      %1129 = vmatprep.subr.mxu0 0.0
      %1130 = vmatpush2.msra.mxu0 0.0
      %1131 = vmatprep.subr.mxu0 0.0
      %1132 = vmatpush2.msra.mxu0 0.0
      %1133 = vmatprep.subr.mxu0 0.0
      %1134 = vmatpush2.msra.mxu0 0.0
      %1135 = vmatprep.subr.mxu0 0.0
      %1136 = vmatpush2.msra.mxu0 0.0
      %1137 = vmatprep.subr.mxu0 0.0
      %1138 = vmatpush2.msra.mxu0 0.0
      %1139 = vmatprep.subr.mxu0 0.0
      %1140 = vmatpush2.msra.mxu0 0.0
      %1141 = vmatprep.subr.mxu0 0.0
      %1142 = vmatpush2.msra.mxu0 0.0
      %1143 = vmatprep.subr.mxu0 0.0
      %1144 = vmatpush2.msra.mxu0 0.0
      %1145 = vmatprep.subr.mxu0 0.0
      %1146 = vmatpush2.msra.mxu0 0.0
      %1147 = vmatprep.subr.mxu0 0.0
      %1148 = vmatpush2.msra.mxu0 0.0
      %1149 = vmatprep.subr.mxu0 0.0
      %1150 = vmatpush2.msra.mxu0 0.0
      %1151 = vmatprep.subr.mxu0 0.0
      %1152 = vmatpush2.msra.mxu0 0.0
      %1153 = vmatprep.subr.mxu0 0.0
      %1154 = vmatpush2.msra.mxu0 0.0
      %1155 = vmatprep.subr.mxu0 0.0
      %1156 = vmatpush2.msra.mxu0 0.0
      %1157 = vmatprep.subr.mxu0 0.0
      %1158 = vmatpush2.msra.mxu0 0.0
      %1159 = vmatprep.mubr.f32.mxu0 0.0
      %1160 = vmatmul.mubr.f32.gmra.mxu0 %v1093
      %v1161 = vpop.f32.mrf.mxu0
      %v1162 = vadd.f32 0.0, %v1161
      %v1163 = vpop.f32.mrf.mxu0
      %1164 = vdwg.mxu0
      %v1165 = vlaneseq
      %v1166 = vshrl.u32 %v1165, 7
      %v1167 = vsub.s32 0, %v1166
      %v1168 = vrot.slane %v1089, %v1167
      %v1169 = vmul.f32 %v851, %v1168
      %v1170 = vmul.f32 %v852, %v1168
      %v1171 = vlaneseq
      %v1172 = vshrl.u32 %v1171, 7
      %v1173 = vsub.s32 0, %v1172
      %v1174 = vrot.slane %v1162, %v1173
      %v1175 = vadd.f32 %v1169, %v1174
      %v1176 = vadd.f32 %v1170, %v1174
      %v1177 = vmax.f32 %v1175, 0.0
      %v1178 = vmax.f32 %v1176, 0.0
      %1179 = vst [vmem:[#allocation3] sm:$0xff] 0.0
      %vm1180 = vcmask 130048
      %1181 = vst.msk [vmem:[#allocation3 + $0x8] sm:$0xff] %vm1180, 0.0
      %1182 = vst [vmem:[#allocation3 + $0x10] sm:$0xff] 0.0
      %1183 = vst.msk [vmem:[#allocation3 + $0x18] sm:$0xff] %vm1180, 0.0
      %1184 = vst [vmem:[#allocation3 + $0x20] sm:$0x3] 0.0
      %vm1185 = vcmask 123904
      %1186 = vst.msk [vmem:[#allocation3 + $0x28] sm:$0x3] %vm1185, 0.0
      %vm1189 = vcmask 1040384
      %v1190 = vrot.slane %v1177, 7
      %v1191 = vrot.slane %v1178, 7
      %v1192 = vsel %vm1189, %v1190, %v1191
      %1193 = vrot.lane.b32.xlu0 %v1190, 8
      %v1194 = vpop.permute.xlu0 %1193
      %1195 = vrot.lane.b32.xlu0 %v1192, 8
      %v1196 = vpop.permute.xlu0 %1195
      %1197 = vrot.lane.b32.xlu0 %v1191, 8
      %v1198 = vpop.permute.xlu0 %1197
      %vm1202 = vcmask 1047617
      %1203 = vst.msk [vmem:[#allocation3] sm:$0xfe] %vm1202, %v1194
      %vm1204 = vcmask 64513
      %1205 = vst.msk [vmem:[#allocation3 + $0x8] sm:$0xfe] %vm1204, %v1194
      %vm1206 = vcmask 1047616
      %1207 = vst.msk [vmem:[#allocation3 + $0x10] sm:$0xff] %vm1206, %v1196
      %1208 = vst.msk [vmem:[#allocation3 + $0x18] sm:$0xff] %vm773, %v1196
      %vm1209 = vcmask 1040448
      %1210 = vst.msk [vmem:[#allocation3 + $0x20] sm:$0x1] %vm1209, %v1198
      %vm1211 = vcmask 57344
      %1212 = vst.msk [vmem:[#allocation3 + $0x28] sm:$0x1] %vm1211, %v1198
      %v1213 = vld [vmem:[%s3 + $0x3] sm:$0x1]
      %v1214 = vld [vmem:[%s3 + $0x4] sm:$0x1]
      %v1215 = vld [vmem:[%s3 + $0x5] sm:$0x1]
      %v1216 = vld [vmem:[#allocation3] sm:$0xff]
      %v1217 = vld [vmem:[#allocation3 + $0x8] sm:$0xff]
      %v1218 = vld [vmem:[#allocation3 + $0x10] sm:$0xff]
      %v1219 = vld [vmem:[#allocation3 + $0x18] sm:$0xff]
      %v1220 = vld [vmem:[%s2] sm:$0xff]
      %v1221 = vld [vmem:[%s2 + $0x8] sm:$0xff]
      %v1222 = vld [vmem:[%s2 + $0x10] sm:$0xff]
      %v1223 = vld [vmem:[%s2 + $0x18] sm:$0xff]
      %v1224 = vld [vmem:[%s2 + $0x20] sm:$0xff]
      %v1225 = vld [vmem:[%s2 + $0x28] sm:$0xff]
      %v1226 = vld [vmem:[%s2 + $0x30] sm:$0xff]
      %v1227 = vld [vmem:[%s2 + $0x38] sm:$0xff]
      %v1228 = vld [vmem:[%s2 + $0x40] sm:$0xff]
      %v1229 = vld [vmem:[%s2 + $0x48] sm:$0xff]
      %v1230 = vld [vmem:[%s2 + $0x50] sm:$0xff]
      %v1231 = vld [vmem:[%s2 + $0x58] sm:$0xff]
      %v1232 = vld [vmem:[%s2 + $0x60] sm:$0xff]
      %v1233 = vld [vmem:[%s2 + $0x68] sm:$0xff]
      %v1234 = vld [vmem:[%s2 + $0x70] sm:$0xff]
      %v1235 = vld [vmem:[%s2 + $0x78] sm:$0xff]
      %v1236 = vld [vmem:[%s2 + $0x80] sm:$0xff]
      %v1237 = vld [vmem:[%s2 + $0x88] sm:$0xff]
      %v1238 = vld [vmem:[#allocation3] sm:$0xfe]
      %v1239 = vld [vmem:[#allocation3 + $0x8] sm:$0xfe]
      %v1240 = vld [vmem:[#allocation3 + $0x20] sm:$0x1]
      %v1241 = vld [vmem:[#allocation3 + $0x28] sm:$0x1]
      %s1242 = scalar_lea.vmem %s2, 144
      %v1243 = vld [vmem:[%s1242] sm:$0xff]
      %v1244 = vld [vmem:[%s1242 + $0x8] sm:$0xff]
      %v1245 = vld [vmem:[%s1242 + $0x10] sm:$0xff]
      %v1246 = vld [vmem:[%s1242 + $0x18] sm:$0xff]
      %v1247 = vld [vmem:[%s1242 + $0x20] sm:$0xff]
      %v1248 = vld [vmem:[%s1242 + $0x28] sm:$0xff]
      %v1249 = vld [vmem:[%s1242 + $0x30] sm:$0xff]
      %v1250 = vld [vmem:[%s1242 + $0x38] sm:$0xff]
      %v1251 = vld [vmem:[%s1242 + $0x40] sm:$0xff]
      %v1252 = vld [vmem:[%s1242 + $0x48] sm:$0xff]
      %v1253 = vld [vmem:[%s1242 + $0x50] sm:$0xff]
      %v1254 = vld [vmem:[%s1242 + $0x58] sm:$0xff]
      %v1255 = vld [vmem:[%s1242 + $0x60] sm:$0xff]
      %v1256 = vld [vmem:[%s1242 + $0x68] sm:$0xff]
      %v1257 = vld [vmem:[%s1242 + $0x70] sm:$0xff]
      %v1258 = vld [vmem:[%s1242 + $0x78] sm:$0xff]
      %v1259 = vld [vmem:[%s1242 + $0x80] sm:$0xff]
      %v1260 = vld [vmem:[%s1242 + $0x88] sm:$0xff]
      %vm1267 = vcmask 1046528
      %v1268 = vrot.slane %v1238, 1
      %v1269 = vrot.slane %v1218, 1
      %v1270 = vsel %vm1267, %v1268, %v1269
      %v1271 = vrot.slane %v1239, 1
      %v1272 = vrot.slane %v1219, 1
      %v1273 = vsel %vm1267, %v1271, %v1272
      %v1274 = vrot.slane %v1240, 1
      %v1275 = vsel %vm1267, %v1269, %v1274
      %v1276 = vrot.slane %v1241, 1
      %v1277 = vsel %vm1267, %v1272, %v1276
      %v1280 = vsel %vm1180, %v1273, 0
      %v1282 = vsel %vm1180, %v1277, 0
      %1284 = vmatprep.subr.mxu0 0.0
      %1285 = vmatpush1.msra.mxu0 %v1258
      %1286 = vmatprep.subr.mxu0 0.0
      %1287 = vmatpush1.msra.mxu0 %v1257
      %1288 = vmatprep.subr.mxu0 0.0
      %1289 = vmatpush1.msra.mxu0 %v1256
      %1290 = vmatprep.subr.mxu0 0.0
      %1291 = vmatpush1.msra.mxu0 %v1255
      %1292 = vmatprep.subr.mxu0 0.0
      %1293 = vmatpush1.msra.mxu0 %v1254
      %1294 = vmatprep.subr.mxu0 0.0
      %1295 = vmatpush1.msra.mxu0 %v1253
      %1296 = vmatprep.subr.mxu0 0.0
      %1297 = vmatpush1.msra.mxu0 %v1252
      %1298 = vmatprep.subr.mxu0 0.0
      %1299 = vmatpush1.msra.mxu0 %v1251
      %1300 = vmatprep.subr.mxu0 0.0
      %1301 = vmatpush1.msra.mxu0 %v1250
      %1302 = vmatprep.subr.mxu0 0.0
      %1303 = vmatpush1.msra.mxu0 %v1249
      %1304 = vmatprep.subr.mxu0 0.0
      %1305 = vmatpush1.msra.mxu0 %v1248
      %1306 = vmatprep.subr.mxu0 0.0
      %1307 = vmatpush1.msra.mxu0 %v1247
      %1308 = vmatprep.subr.mxu0 0.0
      %1309 = vmatpush1.msra.mxu0 %v1246
      %1310 = vmatprep.subr.mxu0 0.0
      %1311 = vmatpush1.msra.mxu0 %v1245
      %1312 = vmatprep.subr.mxu0 0.0
      %1313 = vmatpush1.msra.mxu0 %v1244
      %1314 = vmatprep.subr.mxu0 0.0
      %1315 = vmatpush1.msra.mxu0 %v1243
      %1316 = vmatprep.subr.mxu0 0.0
      %1317 = vmatpush2.msra.mxu0 0.0
      %1318 = vmatprep.subr.mxu0 0.0
      %1319 = vmatpush2.msra.mxu0 0.0
      %1320 = vmatprep.subr.mxu0 0.0
      %1321 = vmatpush2.msra.mxu0 0.0
      %1322 = vmatprep.subr.mxu0 0.0
      %1323 = vmatpush2.msra.mxu0 0.0
      %1324 = vmatprep.subr.mxu0 0.0
      %1325 = vmatpush2.msra.mxu0 0.0
      %1326 = vmatprep.subr.mxu0 0.0
      %1327 = vmatpush2.msra.mxu0 0.0
      %1328 = vmatprep.subr.mxu0 0.0
      %1329 = vmatpush2.msra.mxu0 0.0
      %1330 = vmatprep.subr.mxu0 0.0
      %1331 = vmatpush2.msra.mxu0 0.0
      %1332 = vmatprep.subr.mxu0 0.0
      %1333 = vmatpush2.msra.mxu0 0.0
      %1334 = vmatprep.subr.mxu0 0.0
      %1335 = vmatpush2.msra.mxu0 0.0
      %1336 = vmatprep.subr.mxu0 0.0
      %1337 = vmatpush2.msra.mxu0 0.0
      %1338 = vmatprep.subr.mxu0 0.0
      %1339 = vmatpush2.msra.mxu0 0.0
      %1340 = vmatprep.subr.mxu0 0.0
      %1341 = vmatpush2.msra.mxu0 0.0
      %1342 = vmatprep.subr.mxu0 0.0
      %1343 = vmatpush2.msra.mxu0 0.0
      %1344 = vmatprep.subr.mxu0 0.0
      %1345 = vmatpush2.msra.mxu0 %v1260
      %1346 = vmatprep.subr.mxu0 0.0
      %1347 = vmatpush2.msra.mxu0 %v1259
      %1348 = vmatprep.mubr.f32.mxu0 %v1280
      %1349 = vmatmul.mubr.f32.gmra.mxu0 %v1270
      %v1350 = vpop.f32.mrf.mxu0
      %v1351 = vadd.f32 0.0, %v1350
      %v1352 = vpop.f32.mrf.mxu0
      %1353 = vmatprep.mubr.f32.mxu0 %v1282
      %1354 = vmatmul.mubr.f32.gmra.mxu0 %v1275
      %v1355 = vpop.f32.mrf.mxu0
      %v1356 = vadd.f32 0.0, %v1355
      %v1357 = vpop.f32.mrf.mxu0
      %1358 = vdwg.mxu0
      %v1360 = vsel %vm1180, %v1217, 0
      %v1362 = vsel %vm1180, %v1219, 0
      %1364 = vmatprep.subr.mxu0 0.0
      %1365 = vmatpush1.msra.mxu0 %v1235
      %1366 = vmatprep.subr.mxu0 0.0
      %1367 = vmatpush1.msra.mxu0 %v1234
      %1368 = vmatprep.subr.mxu0 0.0
      %1369 = vmatpush1.msra.mxu0 %v1233
      %1370 = vmatprep.subr.mxu0 0.0
      %1371 = vmatpush1.msra.mxu0 %v1232
      %1372 = vmatprep.subr.mxu0 0.0
      %1373 = vmatpush1.msra.mxu0 %v1231
      %1374 = vmatprep.subr.mxu0 0.0
      %1375 = vmatpush1.msra.mxu0 %v1230
      %1376 = vmatprep.subr.mxu0 0.0
      %1377 = vmatpush1.msra.mxu0 %v1229
      %1378 = vmatprep.subr.mxu0 0.0
      %1379 = vmatpush1.msra.mxu0 %v1228
      %1380 = vmatprep.subr.mxu0 0.0
      %1381 = vmatpush1.msra.mxu0 %v1227
      %1382 = vmatprep.subr.mxu0 0.0
      %1383 = vmatpush1.msra.mxu0 %v1226
      %1384 = vmatprep.subr.mxu0 0.0
      %1385 = vmatpush1.msra.mxu0 %v1225
      %1386 = vmatprep.subr.mxu0 0.0
      %1387 = vmatpush1.msra.mxu0 %v1224
      %1388 = vmatprep.subr.mxu0 0.0
      %1389 = vmatpush1.msra.mxu0 %v1223
      %1390 = vmatprep.subr.mxu0 0.0
      %1391 = vmatpush1.msra.mxu0 %v1222
      %1392 = vmatprep.subr.mxu0 0.0
      %1393 = vmatpush1.msra.mxu0 %v1221
      %1394 = vmatprep.subr.mxu0 0.0
      %1395 = vmatpush1.msra.mxu0 %v1220
      %1396 = vmatprep.subr.mxu0 0.0
      %1397 = vmatpush2.msra.mxu0 0.0
      %1398 = vmatprep.subr.mxu0 0.0
      %1399 = vmatpush2.msra.mxu0 0.0
      %1400 = vmatprep.subr.mxu0 0.0
      %1401 = vmatpush2.msra.mxu0 0.0
      %1402 = vmatprep.subr.mxu0 0.0
      %1403 = vmatpush2.msra.mxu0 0.0
      %1404 = vmatprep.subr.mxu0 0.0
      %1405 = vmatpush2.msra.mxu0 0.0
      %1406 = vmatprep.subr.mxu0 0.0
      %1407 = vmatpush2.msra.mxu0 0.0
      %1408 = vmatprep.subr.mxu0 0.0
      %1409 = vmatpush2.msra.mxu0 0.0
      %1410 = vmatprep.subr.mxu0 0.0
      %1411 = vmatpush2.msra.mxu0 0.0
      %1412 = vmatprep.subr.mxu0 0.0
      %1413 = vmatpush2.msra.mxu0 0.0
      %1414 = vmatprep.subr.mxu0 0.0
      %1415 = vmatpush2.msra.mxu0 0.0
      %1416 = vmatprep.subr.mxu0 0.0
      %1417 = vmatpush2.msra.mxu0 0.0
      %1418 = vmatprep.subr.mxu0 0.0
      %1419 = vmatpush2.msra.mxu0 0.0
      %1420 = vmatprep.subr.mxu0 0.0
      %1421 = vmatpush2.msra.mxu0 0.0
      %1422 = vmatprep.subr.mxu0 0.0
      %1423 = vmatpush2.msra.mxu0 0.0
      %1424 = vmatprep.subr.mxu0 0.0
      %1425 = vmatpush2.msra.mxu0 %v1237
      %1426 = vmatprep.subr.mxu0 0.0
      %1427 = vmatpush2.msra.mxu0 %v1236
      %1428 = vmatprep.mubr.f32.mxu0 %v1360
      %1429 = vmatmul.mubr.f32.gmra.mxu0 %v1216
      %v1430 = vpop.f32.mrf.mxu0
      %v1431 = vadd.f32 %v1351, %v1430
      %v1432 = vpop.f32.mrf.mxu0
      %1433 = vmatprep.mubr.f32.mxu0 %v1362
      %1434 = vmatmul.mubr.f32.gmra.mxu0 %v1218
      %v1435 = vpop.f32.mrf.mxu0
      %v1436 = vadd.f32 %v1356, %v1435
      %v1437 = vpop.f32.mrf.mxu0
      %1438 = vdwg.mxu0
      %v1439 = vld [vmem:[#allocation3] sm:$0xfc]
      %v1440 = vld [vmem:[#allocation3 + $0x8] sm:$0xfc]
      %v1441 = vld [vmem:[#allocation3 + $0x20] sm:$0x3]
      %v1442 = vld [vmem:[#allocation3 + $0x28] sm:$0x3]
      %s1443 = scalar_lea.vmem %s2, 288
      %v1444 = vld [vmem:[%s1443] sm:$0xff]
      %v1445 = vld [vmem:[%s1443 + $0x8] sm:$0xff]
      %v1446 = vld [vmem:[%s1443 + $0x10] sm:$0xff]
      %v1447 = vld [vmem:[%s1443 + $0x18] sm:$0xff]
      %v1448 = vld [vmem:[%s1443 + $0x20] sm:$0xff]
      %v1449 = vld [vmem:[%s1443 + $0x28] sm:$0xff]
      %v1450 = vld [vmem:[%s1443 + $0x30] sm:$0xff]
      %v1451 = vld [vmem:[%s1443 + $0x38] sm:$0xff]
      %v1452 = vld [vmem:[%s1443 + $0x40] sm:$0xff]
      %v1453 = vld [vmem:[%s1443 + $0x48] sm:$0xff]
      %v1454 = vld [vmem:[%s1443 + $0x50] sm:$0xff]
      %v1455 = vld [vmem:[%s1443 + $0x58] sm:$0xff]
      %v1456 = vld [vmem:[%s1443 + $0x60] sm:$0xff]
      %v1457 = vld [vmem:[%s1443 + $0x68] sm:$0xff]
      %v1458 = vld [vmem:[%s1443 + $0x70] sm:$0xff]
      %v1459 = vld [vmem:[%s1443 + $0x78] sm:$0xff]
      %v1460 = vld [vmem:[%s1443 + $0x80] sm:$0xff]
      %v1461 = vld [vmem:[%s1443 + $0x88] sm:$0xff]
      %vm1466 = vcmask 1045504
      %v1467 = vrot.slane %v1439, 2
      %v1468 = vrot.slane %v1218, 2
      %v1469 = vsel %vm1466, %v1467, %v1468
      %v1470 = vrot.slane %v1440, 2
      %v1471 = vrot.slane %v1219, 2
      %v1472 = vsel %vm1466, %v1470, %v1471
      %v1473 = vrot.slane %v1441, 2
      %v1474 = vsel %vm1466, %v1468, %v1473
      %v1475 = vrot.slane %v1442, 2
      %v1476 = vsel %vm1466, %v1471, %v1475
      %v1479 = vsel %vm1180, %v1472, 0
      %v1481 = vsel %vm1180, %v1476, 0
      %1483 = vmatprep.subr.mxu0 0.0
      %1484 = vmatpush1.msra.mxu0 %v1459
      %1485 = vmatprep.subr.mxu0 0.0
      %1486 = vmatpush1.msra.mxu0 %v1458
      %1487 = vmatprep.subr.mxu0 0.0
      %1488 = vmatpush1.msra.mxu0 %v1457
      %1489 = vmatprep.subr.mxu0 0.0
      %1490 = vmatpush1.msra.mxu0 %v1456
      %1491 = vmatprep.subr.mxu0 0.0
      %1492 = vmatpush1.msra.mxu0 %v1455
      %1493 = vmatprep.subr.mxu0 0.0
      %1494 = vmatpush1.msra.mxu0 %v1454
      %1495 = vmatprep.subr.mxu0 0.0
      %1496 = vmatpush1.msra.mxu0 %v1453
      %1497 = vmatprep.subr.mxu0 0.0
      %1498 = vmatpush1.msra.mxu0 %v1452
      %1499 = vmatprep.subr.mxu0 0.0
      %1500 = vmatpush1.msra.mxu0 %v1451
      %1501 = vmatprep.subr.mxu0 0.0
      %1502 = vmatpush1.msra.mxu0 %v1450
      %1503 = vmatprep.subr.mxu0 0.0
      %1504 = vmatpush1.msra.mxu0 %v1449
      %1505 = vmatprep.subr.mxu0 0.0
      %1506 = vmatpush1.msra.mxu0 %v1448
      %1507 = vmatprep.subr.mxu0 0.0
      %1508 = vmatpush1.msra.mxu0 %v1447
      %1509 = vmatprep.subr.mxu0 0.0
      %1510 = vmatpush1.msra.mxu0 %v1446
      %1511 = vmatprep.subr.mxu0 0.0
      %1512 = vmatpush1.msra.mxu0 %v1445
      %1513 = vmatprep.subr.mxu0 0.0
      %1514 = vmatpush1.msra.mxu0 %v1444
      %1515 = vmatprep.subr.mxu0 0.0
      %1516 = vmatpush2.msra.mxu0 0.0
      %1517 = vmatprep.subr.mxu0 0.0
      %1518 = vmatpush2.msra.mxu0 0.0
      %1519 = vmatprep.subr.mxu0 0.0
      %1520 = vmatpush2.msra.mxu0 0.0
      %1521 = vmatprep.subr.mxu0 0.0
      %1522 = vmatpush2.msra.mxu0 0.0
      %1523 = vmatprep.subr.mxu0 0.0
      %1524 = vmatpush2.msra.mxu0 0.0
      %1525 = vmatprep.subr.mxu0 0.0
      %1526 = vmatpush2.msra.mxu0 0.0
      %1527 = vmatprep.subr.mxu0 0.0
      %1528 = vmatpush2.msra.mxu0 0.0
      %1529 = vmatprep.subr.mxu0 0.0
      %1530 = vmatpush2.msra.mxu0 0.0
      %1531 = vmatprep.subr.mxu0 0.0
      %1532 = vmatpush2.msra.mxu0 0.0
      %1533 = vmatprep.subr.mxu0 0.0
      %1534 = vmatpush2.msra.mxu0 0.0
      %1535 = vmatprep.subr.mxu0 0.0
      %1536 = vmatpush2.msra.mxu0 0.0
      %1537 = vmatprep.subr.mxu0 0.0
      %1538 = vmatpush2.msra.mxu0 0.0
      %1539 = vmatprep.subr.mxu0 0.0
      %1540 = vmatpush2.msra.mxu0 0.0
      %1541 = vmatprep.subr.mxu0 0.0
      %1542 = vmatpush2.msra.mxu0 0.0
      %1543 = vmatprep.subr.mxu0 0.0
      %1544 = vmatpush2.msra.mxu0 %v1461
      %1545 = vmatprep.subr.mxu0 0.0
      %1546 = vmatpush2.msra.mxu0 %v1460
      %1547 = vmatprep.mubr.f32.mxu0 %v1479
      %1548 = vmatmul.mubr.f32.gmra.mxu0 %v1469
      %v1549 = vpop.f32.mrf.mxu0
      %v1550 = vadd.f32 0.0, %v1549
      %v1551 = vpop.f32.mrf.mxu0
      %1552 = vmatprep.mubr.f32.mxu0 %v1481
      %1553 = vmatmul.mubr.f32.gmra.mxu0 %v1474
      %v1554 = vpop.f32.mrf.mxu0
      %v1555 = vadd.f32 0.0, %v1554
      %v1556 = vpop.f32.mrf.mxu0
      %1557 = vdwg.mxu0
      %v1558 = vadd.f32 %v1431, %v1550
      %v1559 = vadd.f32 %v1436, %v1555
      %v1561 = vsel %vm773, %v1213, 0
      %1563 = vmatprep.subr.mxu0 0.0
      %1564 = vmatpush1.msra.mxu0 0.0
      %1565 = vmatprep.subr.mxu0 0.0
      %1566 = vmatpush1.msra.mxu0 0.0
      %1567 = vmatprep.subr.mxu0 0.0
      %1568 = vmatpush1.msra.mxu0 0.0
      %1569 = vmatprep.subr.mxu0 0.0
      %1570 = vmatpush1.msra.mxu0 0.0
      %1571 = vmatprep.subr.mxu0 0.0
      %1572 = vmatpush1.msra.mxu0 0.0
      %1573 = vmatprep.subr.mxu0 0.0
      %1574 = vmatpush1.msra.mxu0 0.0
      %1575 = vmatprep.subr.mxu0 0.0
      %1576 = vmatpush1.msra.mxu0 0.0
      %1577 = vmatprep.subr.mxu0 0.0
      %1578 = vmatpush1.msra.mxu0 0.0
      %1579 = vmatprep.subr.mxu0 0.0
      %1580 = vmatpush1.msra.mxu0 0.0
      %1581 = vmatprep.subr.mxu0 0.0
      %1582 = vmatpush1.msra.mxu0 0.0
      %1583 = vmatprep.subr.mxu0 0.0
      %1584 = vmatpush1.msra.mxu0 0.0
      %1585 = vmatprep.subr.mxu0 0.0
      %1586 = vmatpush1.msra.mxu0 0.0
      %1587 = vmatprep.subr.mxu0 0.0
      %1588 = vmatpush1.msra.mxu0 0.0
      %1589 = vmatprep.subr.mxu0 0.0
      %1590 = vmatpush1.msra.mxu0 0.0
      %1591 = vmatprep.subr.mxu0 0.0
      %1592 = vmatpush1.msra.mxu0 0.0
      %1593 = vmatprep.subr.mxu0 0.0
      %1594 = vmatpush1.msra.mxu0 %v471
      %1595 = vmatprep.subr.mxu0 0.0
      %1596 = vmatpush2.msra.mxu0 0.0
      %1597 = vmatprep.subr.mxu0 0.0
      %1598 = vmatpush2.msra.mxu0 0.0
      %1599 = vmatprep.subr.mxu0 0.0
      %1600 = vmatpush2.msra.mxu0 0.0
      %1601 = vmatprep.subr.mxu0 0.0
      %1602 = vmatpush2.msra.mxu0 0.0
      %1603 = vmatprep.subr.mxu0 0.0
      %1604 = vmatpush2.msra.mxu0 0.0
      %1605 = vmatprep.subr.mxu0 0.0
      %1606 = vmatpush2.msra.mxu0 0.0
      %1607 = vmatprep.subr.mxu0 0.0
      %1608 = vmatpush2.msra.mxu0 0.0
      %1609 = vmatprep.subr.mxu0 0.0
      %1610 = vmatpush2.msra.mxu0 0.0
      %1611 = vmatprep.subr.mxu0 0.0
      %1612 = vmatpush2.msra.mxu0 0.0
      %1613 = vmatprep.subr.mxu0 0.0
      %1614 = vmatpush2.msra.mxu0 0.0
      %1615 = vmatprep.subr.mxu0 0.0
      %1616 = vmatpush2.msra.mxu0 0.0
      %1617 = vmatprep.subr.mxu0 0.0
      %1618 = vmatpush2.msra.mxu0 0.0
      %1619 = vmatprep.subr.mxu0 0.0
      %1620 = vmatpush2.msra.mxu0 0.0
      %1621 = vmatprep.subr.mxu0 0.0
      %1622 = vmatpush2.msra.mxu0 0.0
      %1623 = vmatprep.subr.mxu0 0.0
      %1624 = vmatpush2.msra.mxu0 0.0
      %1625 = vmatprep.subr.mxu0 0.0
      %1626 = vmatpush2.msra.mxu0 0.0
      %1627 = vmatprep.mubr.f32.mxu0 0.0
      %1628 = vmatmul.mubr.f32.gmra.mxu0 %v1561
      %v1629 = vpop.f32.mrf.mxu0
      %v1630 = vadd.f32 0.0, %v1629
      %v1631 = vpop.f32.mrf.mxu0
      %1632 = vdwg.mxu0
      %v1633 = vlaneseq
      %v1634 = vshrl.u32 %v1633, 7
      %v1635 = vsub.s32 0, %v1634
      %v1636 = vrot.slane %v1630, %v1635
      %v1637 = vadd.f32 %v1558, %v1636
      %v1638 = vadd.f32 %v1559, %v1636
      %v1639 = vadd.f32 %v1637, %v1638
      %v1640 = vrot.slane %v1639, 4
      %v1641 = vadd.f32 %v1639, %v1640
      %v1642 = vrot.slane %v1641, 2
      %v1643 = vadd.f32 %v1641, %v1642
      %v1644 = vrot.slane %v1643, 1
      %v1645 = vadd.f32 %v1643, %v1644
      %v1646 = vmul.f32 %v1637, %v1637
      %v1647 = vmul.f32 %v1638, %v1638
      %v1648 = vadd.f32 %v1646, %v1647
      %v1649 = vrot.slane %v1648, 4
      %v1650 = vadd.f32 %v1648, %v1649
      %v1651 = vrot.slane %v1650, 2
      %v1652 = vadd.f32 %v1650, %v1651
      %v1653 = vrot.slane %v1652, 1
      %v1654 = vadd.f32 %v1652, %v1653
      %1655 = vmatprep.subr.mxu0 0.0
      %1656 = vmatpush1.msra.mxu0 %v456
      %1657 = vmatprep.subr.mxu0 0.0
      %1658 = vmatpush1.msra.mxu0 %v455
      %1659 = vmatprep.subr.mxu0 0.0
      %1660 = vmatpush1.msra.mxu0 %v454
      %1661 = vmatprep.subr.mxu0 0.0
      %1662 = vmatpush1.msra.mxu0 %v453
      %1663 = vmatprep.subr.mxu0 0.0
      %1664 = vmatpush1.msra.mxu0 %v452
      %1665 = vmatprep.subr.mxu0 0.0
      %1666 = vmatpush1.msra.mxu0 %v451
      %1667 = vmatprep.subr.mxu0 0.0
      %1668 = vmatpush1.msra.mxu0 %v450
      %1669 = vmatprep.subr.mxu0 0.0
      %1670 = vmatpush1.msra.mxu0 %v449
      %1671 = vmatprep.subr.mxu0 0.0
      %1672 = vmatpush1.msra.mxu0 %v448
      %1673 = vmatprep.subr.mxu0 0.0
      %1674 = vmatpush1.msra.mxu0 %v447
      %1675 = vmatprep.subr.mxu0 0.0
      %1676 = vmatpush1.msra.mxu0 %v446
      %1677 = vmatprep.subr.mxu0 0.0
      %1678 = vmatpush1.msra.mxu0 %v445
      %1679 = vmatprep.subr.mxu0 0.0
      %1680 = vmatpush1.msra.mxu0 %v444
      %1681 = vmatprep.subr.mxu0 0.0
      %1682 = vmatpush1.msra.mxu0 %v443
      %1683 = vmatprep.subr.mxu0 0.0
      %1684 = vmatpush1.msra.mxu0 %v442
      %1685 = vmatprep.subr.mxu0 0.0
      %1686 = vmatpush1.msra.mxu0 %v441
      %1687 = vmatprep.subr.mxu0 0.0
      %1688 = vmatpush2.msra.mxu0 0.0
      %1689 = vmatprep.subr.mxu0 0.0
      %1690 = vmatpush2.msra.mxu0 0.0
      %1691 = vmatprep.subr.mxu0 0.0
      %1692 = vmatpush2.msra.mxu0 0.0
      %1693 = vmatprep.subr.mxu0 0.0
      %1694 = vmatpush2.msra.mxu0 0.0
      %1695 = vmatprep.subr.mxu0 0.0
      %1696 = vmatpush2.msra.mxu0 0.0
      %1697 = vmatprep.subr.mxu0 0.0
      %1698 = vmatpush2.msra.mxu0 0.0
      %1699 = vmatprep.subr.mxu0 0.0
      %1700 = vmatpush2.msra.mxu0 0.0
      %1701 = vmatprep.subr.mxu0 0.0
      %1702 = vmatpush2.msra.mxu0 0.0
      %1703 = vmatprep.subr.mxu0 0.0
      %1704 = vmatpush2.msra.mxu0 0.0
      %1705 = vmatprep.subr.mxu0 0.0
      %1706 = vmatpush2.msra.mxu0 0.0
      %1707 = vmatprep.subr.mxu0 0.0
      %1708 = vmatpush2.msra.mxu0 0.0
      %1709 = vmatprep.subr.mxu0 0.0
      %1710 = vmatpush2.msra.mxu0 0.0
      %1711 = vmatprep.subr.mxu0 0.0
      %1712 = vmatpush2.msra.mxu0 0.0
      %1713 = vmatprep.subr.mxu0 0.0
      %1714 = vmatpush2.msra.mxu0 0.0
      %1715 = vmatprep.subr.mxu0 0.0
      %1716 = vmatpush2.msra.mxu0 0.0
      %1717 = vmatprep.subr.mxu0 0.0
      %1718 = vmatpush2.msra.mxu0 0.0
      %1719 = vmatprep.mubr.f32.mxu0 0.0
      %1720 = vmatmul.mubr.f32.gmra.mxu0 %v1645
      %v1721 = vpop.f32.mrf.mxu0
      %v1722 = vadd.f32 0.0, %v1721
      %v1723 = vpop.f32.mrf.mxu0
      %1724 = vdwg.mxu0
      %v1725 = vmul.f32 %v1722, 0.00390625
      %1726 = vmatprep.subr.mxu0 0.0
      %1727 = vmatpush1.msra.mxu0 %v456
      %1728 = vmatprep.subr.mxu0 0.0
      %1729 = vmatpush1.msra.mxu0 %v455
      %1730 = vmatprep.subr.mxu0 0.0
      %1731 = vmatpush1.msra.mxu0 %v454
      %1732 = vmatprep.subr.mxu0 0.0
      %1733 = vmatpush1.msra.mxu0 %v453
      %1734 = vmatprep.subr.mxu0 0.0
      %1735 = vmatpush1.msra.mxu0 %v452
      %1736 = vmatprep.subr.mxu0 0.0
      %1737 = vmatpush1.msra.mxu0 %v451
      %1738 = vmatprep.subr.mxu0 0.0
      %1739 = vmatpush1.msra.mxu0 %v450
      %1740 = vmatprep.subr.mxu0 0.0
      %1741 = vmatpush1.msra.mxu0 %v449
      %1742 = vmatprep.subr.mxu0 0.0
      %1743 = vmatpush1.msra.mxu0 %v448
      %1744 = vmatprep.subr.mxu0 0.0
      %1745 = vmatpush1.msra.mxu0 %v447
      %1746 = vmatprep.subr.mxu0 0.0
      %1747 = vmatpush1.msra.mxu0 %v446
      %1748 = vmatprep.subr.mxu0 0.0
      %1749 = vmatpush1.msra.mxu0 %v445
      %1750 = vmatprep.subr.mxu0 0.0
      %1751 = vmatpush1.msra.mxu0 %v444
      %1752 = vmatprep.subr.mxu0 0.0
      %1753 = vmatpush1.msra.mxu0 %v443
      %1754 = vmatprep.subr.mxu0 0.0
      %1755 = vmatpush1.msra.mxu0 %v442
      %1756 = vmatprep.subr.mxu0 0.0
      %1757 = vmatpush1.msra.mxu0 %v441
      %1758 = vmatprep.subr.mxu0 0.0
      %1759 = vmatpush2.msra.mxu0 0.0
      %1760 = vmatprep.subr.mxu0 0.0
      %1761 = vmatpush2.msra.mxu0 0.0
      %1762 = vmatprep.subr.mxu0 0.0
      %1763 = vmatpush2.msra.mxu0 0.0
      %1764 = vmatprep.subr.mxu0 0.0
      %1765 = vmatpush2.msra.mxu0 0.0
      %1766 = vmatprep.subr.mxu0 0.0
      %1767 = vmatpush2.msra.mxu0 0.0
      %1768 = vmatprep.subr.mxu0 0.0
      %1769 = vmatpush2.msra.mxu0 0.0
      %1770 = vmatprep.subr.mxu0 0.0
      %1771 = vmatpush2.msra.mxu0 0.0
      %1772 = vmatprep.subr.mxu0 0.0
      %1773 = vmatpush2.msra.mxu0 0.0
      %1774 = vmatprep.subr.mxu0 0.0
      %1775 = vmatpush2.msra.mxu0 0.0
      %1776 = vmatprep.subr.mxu0 0.0
      %1777 = vmatpush2.msra.mxu0 0.0
      %1778 = vmatprep.subr.mxu0 0.0
      %1779 = vmatpush2.msra.mxu0 0.0
      %1780 = vmatprep.subr.mxu0 0.0
      %1781 = vmatpush2.msra.mxu0 0.0
      %1782 = vmatprep.subr.mxu0 0.0
      %1783 = vmatpush2.msra.mxu0 0.0
      %1784 = vmatprep.subr.mxu0 0.0
      %1785 = vmatpush2.msra.mxu0 0.0
      %1786 = vmatprep.subr.mxu0 0.0
      %1787 = vmatpush2.msra.mxu0 0.0
      %1788 = vmatprep.subr.mxu0 0.0
      %1789 = vmatpush2.msra.mxu0 0.0
      %1790 = vmatprep.mubr.f32.mxu0 0.0
      %1791 = vmatmul.mubr.f32.gmra.mxu0 %v1654
      %v1792 = vpop.f32.mrf.mxu0
      %v1793 = vadd.f32 0.0, %v1792
      %v1794 = vpop.f32.mrf.mxu0
      %1795 = vdwg.mxu0
      %v1796 = vmul.f32 %v1793, 0.00390625
      %v1797 = vmul.f32 %v1725, %v1725
      %v1798 = vsub.f32 %v1796, %v1797
      %v1799 = vmax.f32 %v1798, 0.0
      %v1800 = vadd.f32 %v1799, 1e-05
      %v1801 = vrsqrt.pop %v1800
      %v1802 = vmul.f32 %v1214, %v1801
      %v1803 = vmul.f32 %v1725, %v1802
      %v1804 = vsub.f32 %v1215, %v1803
      %v1806 = vsel %vm773, %v1802, 0
      %1808 = vmatprep.subr.mxu0 0.0
      %1809 = vmatpush1.msra.mxu0 0.0
      %1810 = vmatprep.subr.mxu0 0.0
      %1811 = vmatpush1.msra.mxu0 0.0
      %1812 = vmatprep.subr.mxu0 0.0
      %1813 = vmatpush1.msra.mxu0 0.0
      %1814 = vmatprep.subr.mxu0 0.0
      %1815 = vmatpush1.msra.mxu0 0.0
      %1816 = vmatprep.subr.mxu0 0.0
      %1817 = vmatpush1.msra.mxu0 0.0
      %1818 = vmatprep.subr.mxu0 0.0
      %1819 = vmatpush1.msra.mxu0 0.0
      %1820 = vmatprep.subr.mxu0 0.0
      %1821 = vmatpush1.msra.mxu0 0.0
      %1822 = vmatprep.subr.mxu0 0.0
      %1823 = vmatpush1.msra.mxu0 0.0
      %1824 = vmatprep.subr.mxu0 0.0
      %1825 = vmatpush1.msra.mxu0 0.0
      %1826 = vmatprep.subr.mxu0 0.0
      %1827 = vmatpush1.msra.mxu0 0.0
      %1828 = vmatprep.subr.mxu0 0.0
      %1829 = vmatpush1.msra.mxu0 0.0
      %1830 = vmatprep.subr.mxu0 0.0
      %1831 = vmatpush1.msra.mxu0 0.0
      %1832 = vmatprep.subr.mxu0 0.0
      %1833 = vmatpush1.msra.mxu0 0.0
      %1834 = vmatprep.subr.mxu0 0.0
      %1835 = vmatpush1.msra.mxu0 0.0
      %1836 = vmatprep.subr.mxu0 0.0
      %1837 = vmatpush1.msra.mxu0 0.0
      %1838 = vmatprep.subr.mxu0 0.0
      %1839 = vmatpush1.msra.mxu0 %v471
      %1840 = vmatprep.subr.mxu0 0.0
      %1841 = vmatpush2.msra.mxu0 0.0
      %1842 = vmatprep.subr.mxu0 0.0
      %1843 = vmatpush2.msra.mxu0 0.0
      %1844 = vmatprep.subr.mxu0 0.0
      %1845 = vmatpush2.msra.mxu0 0.0
      %1846 = vmatprep.subr.mxu0 0.0
      %1847 = vmatpush2.msra.mxu0 0.0
      %1848 = vmatprep.subr.mxu0 0.0
      %1849 = vmatpush2.msra.mxu0 0.0
      %1850 = vmatprep.subr.mxu0 0.0
      %1851 = vmatpush2.msra.mxu0 0.0
      %1852 = vmatprep.subr.mxu0 0.0
      %1853 = vmatpush2.msra.mxu0 0.0
      %1854 = vmatprep.subr.mxu0 0.0
      %1855 = vmatpush2.msra.mxu0 0.0
      %1856 = vmatprep.subr.mxu0 0.0
      %1857 = vmatpush2.msra.mxu0 0.0
      %1858 = vmatprep.subr.mxu0 0.0
      %1859 = vmatpush2.msra.mxu0 0.0
      %1860 = vmatprep.subr.mxu0 0.0
      %1861 = vmatpush2.msra.mxu0 0.0
      %1862 = vmatprep.subr.mxu0 0.0
      %1863 = vmatpush2.msra.mxu0 0.0
      %1864 = vmatprep.subr.mxu0 0.0
      %1865 = vmatpush2.msra.mxu0 0.0
      %1866 = vmatprep.subr.mxu0 0.0
      %1867 = vmatpush2.msra.mxu0 0.0
      %1868 = vmatprep.subr.mxu0 0.0
      %1869 = vmatpush2.msra.mxu0 0.0
      %1870 = vmatprep.subr.mxu0 0.0
      %1871 = vmatpush2.msra.mxu0 0.0
      %1872 = vmatprep.mubr.f32.mxu0 0.0
      %1873 = vmatmul.mubr.f32.gmra.mxu0 %v1806
      %v1874 = vpop.f32.mrf.mxu0
      %v1875 = vadd.f32 0.0, %v1874
      %v1876 = vpop.f32.mrf.mxu0
      %1877 = vdwg.mxu0
      %v1879 = vsel %vm773, %v1804, 0
      %1881 = vmatprep.subr.mxu0 0.0
      %1882 = vmatpush1.msra.mxu0 0.0
      %1883 = vmatprep.subr.mxu0 0.0
      %1884 = vmatpush1.msra.mxu0 0.0
      %1885 = vmatprep.subr.mxu0 0.0
      %1886 = vmatpush1.msra.mxu0 0.0
      %1887 = vmatprep.subr.mxu0 0.0
      %1888 = vmatpush1.msra.mxu0 0.0
      %1889 = vmatprep.subr.mxu0 0.0
      %1890 = vmatpush1.msra.mxu0 0.0
      %1891 = vmatprep.subr.mxu0 0.0
      %1892 = vmatpush1.msra.mxu0 0.0
      %1893 = vmatprep.subr.mxu0 0.0
      %1894 = vmatpush1.msra.mxu0 0.0
      %1895 = vmatprep.subr.mxu0 0.0
      %1896 = vmatpush1.msra.mxu0 0.0
      %1897 = vmatprep.subr.mxu0 0.0
      %1898 = vmatpush1.msra.mxu0 0.0
      %1899 = vmatprep.subr.mxu0 0.0
      %1900 = vmatpush1.msra.mxu0 0.0
      %1901 = vmatprep.subr.mxu0 0.0
      %1902 = vmatpush1.msra.mxu0 0.0
      %1903 = vmatprep.subr.mxu0 0.0
      %1904 = vmatpush1.msra.mxu0 0.0
      %1905 = vmatprep.subr.mxu0 0.0
      %1906 = vmatpush1.msra.mxu0 0.0
      %1907 = vmatprep.subr.mxu0 0.0
      %1908 = vmatpush1.msra.mxu0 0.0
      %1909 = vmatprep.subr.mxu0 0.0
      %1910 = vmatpush1.msra.mxu0 0.0
      %1911 = vmatprep.subr.mxu0 0.0
      %1912 = vmatpush1.msra.mxu0 %v471
      %1913 = vmatprep.subr.mxu0 0.0
      %1914 = vmatpush2.msra.mxu0 0.0
      %1915 = vmatprep.subr.mxu0 0.0
      %1916 = vmatpush2.msra.mxu0 0.0
      %1917 = vmatprep.subr.mxu0 0.0
      %1918 = vmatpush2.msra.mxu0 0.0
      %1919 = vmatprep.subr.mxu0 0.0
      %1920 = vmatpush2.msra.mxu0 0.0
      %1921 = vmatprep.subr.mxu0 0.0
      %1922 = vmatpush2.msra.mxu0 0.0
      %1923 = vmatprep.subr.mxu0 0.0
      %1924 = vmatpush2.msra.mxu0 0.0
      %1925 = vmatprep.subr.mxu0 0.0
      %1926 = vmatpush2.msra.mxu0 0.0
      %1927 = vmatprep.subr.mxu0 0.0
      %1928 = vmatpush2.msra.mxu0 0.0
      %1929 = vmatprep.subr.mxu0 0.0
      %1930 = vmatpush2.msra.mxu0 0.0
      %1931 = vmatprep.subr.mxu0 0.0
      %1932 = vmatpush2.msra.mxu0 0.0
      %1933 = vmatprep.subr.mxu0 0.0
      %1934 = vmatpush2.msra.mxu0 0.0
      %1935 = vmatprep.subr.mxu0 0.0
      %1936 = vmatpush2.msra.mxu0 0.0
      %1937 = vmatprep.subr.mxu0 0.0
      %1938 = vmatpush2.msra.mxu0 0.0
      %1939 = vmatprep.subr.mxu0 0.0
      %1940 = vmatpush2.msra.mxu0 0.0
      %1941 = vmatprep.subr.mxu0 0.0
      %1942 = vmatpush2.msra.mxu0 0.0
      %1943 = vmatprep.subr.mxu0 0.0
      %1944 = vmatpush2.msra.mxu0 0.0
      %1945 = vmatprep.mubr.f32.mxu0 0.0
      %1946 = vmatmul.mubr.f32.gmra.mxu0 %v1879
      %v1947 = vpop.f32.mrf.mxu0
      %v1948 = vadd.f32 0.0, %v1947
      %v1949 = vpop.f32.mrf.mxu0
      %1950 = vdwg.mxu0
      %v1951 = vlaneseq
      %v1952 = vshrl.u32 %v1951, 7
      %v1953 = vsub.s32 0, %v1952
      %v1954 = vrot.slane %v1875, %v1953
      %v1955 = vmul.f32 %v1637, %v1954
      %v1956 = vmul.f32 %v1638, %v1954
      %v1957 = vlaneseq
      %v1958 = vshrl.u32 %v1957, 7
      %v1959 = vsub.s32 0, %v1958
      %v1960 = vrot.slane %v1948, %v1959
      %v1961 = vadd.f32 %v1955, %v1960
      %v1962 = vadd.f32 %v1956, %v1960
      %v1963 = vmax.f32 %v1961, 0.0
      %v1964 = vmax.f32 %v1962, 0.0
      %1965 = vst [vmem:[%s197] sm:$0xff] %v1963
      %1966 = vst [vmem:[%s197 + $0x8] sm:$0xff] %v1964
      %p1967 = scmp.lt.s32.totalorder %s15, 1
      %s1968 = scalar_select %p1967, %s15, 1
      %s1969 = smul.addr %s1968, 2
      %s1970 = smul.addr %s1969, 8
      %s1971 = scalar_lea.vmem %s4, %s1970
      // Predicated region
      $region37: #{subnet2conv_forward.1} parent=35 // pred_check
        %p1972 = pneg %p122
      $region38: #{subnet2conv_forward.1} parent=35 // pred_check_branch
        %1974 = sbr.rel (%p1972) target = $region40
      $region39: #{subnet2conv_forward.1} parent=35 // pred_region
        _
      $region40: #{subnet2conv_forward.1} parent=35 // pred_fallthru
        _
    $region36: #{subnet2conv_forward.1} parent=5 // pred_fallthru
      _
    %p1975 = scmp.le.s32.totalorder 2, %s10
    // Predicated region
    $region41: #{subnet2conv_forward.1} parent=5 // pred_check
      %p1976 = pneg %p1975
    $region42: #{subnet2conv_forward.1} parent=5 // pred_check_branch
      %1978 = sbr.rel (%p1976) target = $region44
    $region43: #{subnet2conv_forward.1} parent=5 // pred_region
      %s1979 = ssub.s32 %s10, 2
      // Predicated region
      $region45: #{subnet2conv_forward.1} parent=43 // pred_check
        %p1980 = pneg %p128
      $region46: #{subnet2conv_forward.1} parent=43 // pred_check_branch
        %1982 = sbr.rel (%p1980) target = $region48
      $region47: #{subnet2conv_forward.1} parent=43 // pred_region
        %p1983 = scmp.lt.s32.totalorder %s16, 1
        %s1984 = scalar_select %p1983, %s16, 1
        %s1985 = smul.addr %s1984, 2
        %s1986 = smul.addr %s1985, 8
        %s1987 = scalar_lea.vmem %s4, %s1986
      $region48: #{subnet2conv_forward.1} parent=43 // pred_fallthru
        _
    $region44: #{subnet2conv_forward.1} parent=5 // pred_fallthru
      _
  $region6: #{subnet2conv_forward.1} parent=0 // loop_footer
    %s14 = sadd.s32 1, %s10
  $region7: #{subnet2conv_forward.1} parent=0 // loop_footer_branch
    %9 = sbr.rel target = $region3
  $region8: #{subnet2conv_forward.1} parent=0 // loop_exit
    _

</llo_original>
